<compile_context>
chip_gen: v7x
topology: tpu7x:2x2x1
jax: 0.10.0
libtpu: 0.0.40
codegen_flags: <defaults>
</compile_context>

<pallas_src>
import functools

import jax
import jax.numpy as jnp
from jax.experimental import pallas as pl
from jax.experimental.pallas import tpu as pltpu

_HID = 400        # logical hidden size (PyTorch module)
_HID_PAD = 512    # zero-padded hidden size (lane/MXU aligned)


def _ceil_to(x, m):
    return -(-x // m) * m


def _vae_kernel(x_ref, eps_ref,
                w1_ref, b1_ref,
                w2_ref, b2_ref,       # fused + lane-padded [w21 | w22 | 0], [b21 | b22 | 0]
                w3_ref, b3_ref,
                w4_ref, b4_ref,
                recon_ref, mulogvar_ref):
    """One batch-tile of the VAE forward, fully VMEM resident."""
    L = eps_ref.shape[1]

    x = x_ref[...]                    # (TB, D) bf16 (cast in wrapper)
    eps = eps_ref[...]                # (TB, L) f32

    def mm(a, w_ref):
        # bf16 MXU inputs, f32 accumulation.
        return jnp.dot(a.astype(jnp.bfloat16), w_ref[...],
                       preferred_element_type=jnp.float32)

    # ---- encode ----
    h1 = jnp.maximum(mm(x, w1_ref) + b1_ref[...], 0.0)          # (TB, HID_PAD) ReLU

    ml = mm(h1, w2_ref) + b2_ref[...]                            # (TB, LP2) packed mu|logvar|0
    mu = ml[:, :L]
    logvar = ml[:, L:2 * L]

    # ---- reparameterize ----
    std = jnp.exp(0.5 * logvar)
    z = mu + eps * std                                           # (TB, L)

    # ---- decode ----
    h3 = jnp.maximum(mm(z, w3_ref) + b3_ref[...], 0.0)           # (TB, HID_PAD) ReLU
    logits = mm(h3, w4_ref) + b4_ref[...]                        # (TB, D)

    recon_ref[...] = 0.5 * jnp.tanh(0.5 * logits) + 0.5          # exact sigmoid (EUP tanh)
    mulogvar_ref[...] = ml                                       # lane-dense packed out


def _pick_batch_tile(B, D, hid_pad):
    """Pick (TB, Bp): batch tile and padded batch.

    Goals: >=2 grid steps when affordable (both v7x TensorCores), tiles large
    enough to amortize per-step overhead, per-tile VMEM that fits v7x's 64 MiB,
    minimal zero-row padding waste for awkward batch sizes.
    """
    B8 = max(8, _ceil_to(B, 8))
    # Rough per-row VMEM bytes: double-buffered x(bf16)+recon(f32) tiles,
    # eps/mulogvar tiles, and f32 h1/h3/logits temporaries.
    per_row = 2 * D * 2 + 2 * D * 4 + 4 * 256 * 4 + (2 * hid_pad + D) * 4
    tb_cap = max(8, min(1024, ((20 << 20) // per_row) // 8 * 8))

    if B8 <= 16:
        return B8, B8                                   # tiny batch: one tile
    if B8 <= 2 * tb_cap:
        tb = min(tb_cap, _ceil_to(B8 // 2, 8))          # exactly 2 tiles
        return tb, _ceil_to(B8, tb)
    # Many tiles: minimize padding waste; prefer bigger tiles on ties.
    cands = {tb_cap, max(8, (tb_cap // 16) * 8), 512, 384, 256, 128}
    cands = sorted(t for t in cands if 8 <= t <= tb_cap and t % 8 == 0)
    best_tb, best_key = None, None
    for tb in cands:
        bp = _ceil_to(B8, tb)
        key = (bp - B, -tb)
        if best_key is None or key < best_key:
            best_key, best_tb = key, tb
    return best_tb, _ceil_to(B8, best_tb)


@functools.partial(jax.jit, static_argnames=("size",))
def vae_forward(x, eps, params, size):
    """x: (B, H, W) f32; eps: (B, latent_dim) f32 ~ N(0,1). Returns (recon, mu, logvar)."""
    H, W = size
    D = H * W
    B = x.shape[0]
    L = eps.shape[1]
    HIDP = params["w1"].shape[1]          # padded hidden (512)
    LP2 = params["w2"].shape[1]           # padded packed mu|logvar width (>=128)

    # x.view(-1, H*W); bf16 on the wire (MXU consumes bf16 anyway).
    xf = x.reshape(B, D).astype(jnp.bfloat16)

    TB, Bp = _pick_batch_tile(B, D, HIDP)
    if Bp != B:
        xf = jnp.pad(xf, ((0, Bp - B), (0, 0)))
        eps_p = jnp.pad(eps, ((0, Bp - B), (0, 0)))
    else:
        eps_p = eps
    grid = (Bp // TB,)

    # Weight/bias specs: full array, resident across batch tiles.
    def w_spec(shape):
        return pl.BlockSpec(shape, lambda i: (0, 0))

    weight_args = (params["w1"], params["b1"], params["w2"], params["b2"],
                   params["w3"], params["b3"], params["w4"], params["b4"])
    weight_bytes = sum(int(w.size) * w.dtype.itemsize for w in weight_args)
    per_row = 2 * D * 2 + 2 * D * 4 + 4 * LP2 * 4 + (2 * HIDP + D) * 4
    vmem_limit = int(min(max(2 * weight_bytes + TB * per_row + (2 << 20), 16 << 20),
                         100 << 20))

    recon, mulogvar = pl.pallas_call(
        _vae_kernel,
        out_shape=(
            jax.ShapeDtypeStruct((Bp, D), jnp.float32),
            jax.ShapeDtypeStruct((Bp, LP2), jnp.float32),
        ),
        grid_spec=pltpu.PrefetchScalarGridSpec(
            num_scalar_prefetch=0,
            grid=grid,
            in_specs=[
                pl.BlockSpec((TB, D), lambda i: (i, 0)),        # x (bf16)
                pl.BlockSpec((TB, L), lambda i: (i, 0)),        # eps (f32)
                w_spec((D, HIDP)),    w_spec((1, HIDP)),        # w1, b1
                w_spec((HIDP, LP2)),  w_spec((1, LP2)),         # w2 (fused, lane-padded), b2
                w_spec((L, HIDP)),    w_spec((1, HIDP)),        # w3, b3
                w_spec((HIDP, D)),    w_spec((1, D)),           # w4, b4
            ],
            out_specs=[
                pl.BlockSpec((TB, D), lambda i: (i, 0)),        # recon
                pl.BlockSpec((TB, LP2), lambda i: (i, 0)),      # packed mu|logvar (lane-dense)
            ],
        ),
        compiler_params=pltpu.CompilerParams(
            dimension_semantics=("parallel",),
            vmem_limit_bytes=vmem_limit,
        ),
    )(xf, eps_p, *weight_args)

    recon = recon[:B]
    mu = mulogvar[:B, :L]
    logvar = mulogvar[:B, L:2 * L]
    return recon, mu, logvar


def init_params(key, latent_dim, size):
    """Synthetic params matching the PyTorch module's shapes.

    Weights stored transposed (in, out) in bf16; fc21/fc22 fused into one
    projection whose output is zero-padded to a 128-lane multiple; the hidden
    dim is zero-padded 400 -> 512 (zero rows/cols keep results identical)."""
    D = size[0] * size[1]
    L = latent_dim
    LP2 = max(128, _ceil_to(2 * L, 128))
    ks = jax.random.split(key, 10)

    def lin(kw, kb, fan_in, fan_out):
        scale = 1.0 / jnp.sqrt(fan_in)
        w = jax.random.uniform(kw, (fan_in, fan_out), jnp.float32, -scale, scale)
        b = jax.random.uniform(kb, (1, fan_out), jnp.float32, -scale, scale)
        return w, b

    w1, b1 = lin(ks[0], ks[1], D, _HID)
    w21, b21 = lin(ks[2], ks[3], _HID, L)
    w22, b22 = lin(ks[4], ks[5], _HID, L)
    w3, b3 = lin(ks[6], ks[7], L, _HID)
    w4, b4 = lin(ks[8], ks[9], _HID, D)

    hp = _HID_PAD - _HID
    # fc1: pad output (hidden) cols with zeros -> padded hidden units are exactly 0.
    w1 = jnp.pad(w1, ((0, 0), (0, hp)))
    b1 = jnp.pad(b1, ((0, 0), (0, hp)))
    # fused mu|logvar proj: pad input (hidden) rows and output lanes with zeros.
    w2 = jnp.concatenate([w21, w22], axis=1)
    w2 = jnp.pad(w2, ((0, hp), (0, LP2 - 2 * L)))
    b2 = jnp.pad(jnp.concatenate([b21, b22], axis=1), ((0, 0), (0, LP2 - 2 * L)))
    # fc3: pad output (hidden) cols; fc4: pad input (hidden) rows.
    w3 = jnp.pad(w3, ((0, 0), (0, hp)))
    b3 = jnp.pad(b3, ((0, 0), (0, hp)))
    w4 = jnp.pad(w4, ((0, hp), (0, 0)))

    return {
        "w1": w1.astype(jnp.bfloat16), "b1": b1,
        "w2": w2.astype(jnp.bfloat16), "b2": b2,
        "w3": w3.astype(jnp.bfloat16), "b3": b3,
        "w4": w4.astype(jnp.bfloat16), "b4": b4,
    }


def vae_forward_ref(x, eps, params, size):
    """Pure-JAX reference with identical mixed precision (bf16 inputs, f32 accum)."""
    D = size[0] * size[1]
    L = eps.shape[1]
    xf = x.reshape(-1, D)

    def mm(a, w):
        return jnp.dot(a.astype(jnp.bfloat16), w, preferred_element_type=jnp.float32)

    h1 = jnp.maximum(mm(xf, params["w1"]) + params["b1"], 0.0)
    ml = mm(h1, params["w2"]) + params["b2"]
    mu, logvar = ml[:, :L], ml[:, L:2 * L]
    std = jnp.exp(0.5 * logvar)
    z = mu + eps * std
    h3 = jnp.maximum(mm(z, params["w3"]) + params["b3"], 0.0)
    recon = jax.nn.sigmoid(mm(h3, params["w4"]) + params["b4"])
    return recon, mu, logvar


if __name__ == "__main__":
    # Small shapes consistent with the module: size=(16,16) -> input dim 256.
    B = 2
    size = (16, 16)
    latent_dim = 32

    key = jax.random.PRNGKey(0)
    k_params, k_x, k_eps = jax.random.split(key, 3)

    params = init_params(k_params, latent_dim, size)
    x = jax.random.uniform(k_x, (B, size[0], size[1]), jnp.float32)
    # eps corresponds to torch.randn_like(std); supplied deterministically from host.
    eps = jax.random.normal(k_eps, (B, latent_dim), jnp.float32)

    recon, mu, logvar = vae_forward(x, eps, params, size)
    jax.block_until_ready((recon, mu, logvar))

    r_ref, mu_ref, lv_ref = vae_forward_ref(x, eps, params, size)
    assert recon.shape == (B, size[0] * size[1])
    assert mu.shape == (B, latent_dim) and logvar.shape == (B, latent_dim)
    assert jnp.allclose(mu, mu_ref, atol=2e-3, rtol=2e-3)
    assert jnp.allclose(logvar, lv_ref, atol=2e-3, rtol=2e-3)
    assert jnp.allclose(recon, r_ref, atol=2e-3, rtol=2e-3)

    print("KERNEL_OK")
</pallas_src>

<mosaic_0001>
module attributes {stable_mosaic.version = 11 : i64} {
  func.func @_vae_kernel(%arg0: i32, %arg1: memref<8x256xbf16, #tpu.memory_space<vmem>>, %arg2: memref<8x32xf32, #tpu.memory_space<vmem>>, %arg3: memref<256x512xbf16, #tpu.memory_space<vmem>>, %arg4: memref<1x512xf32, #tpu.memory_space<vmem>>, %arg5: memref<512x128xbf16, #tpu.memory_space<vmem>>, %arg6: memref<1x128xf32, #tpu.memory_space<vmem>>, %arg7: memref<32x512xbf16, #tpu.memory_space<vmem>>, %arg8: memref<1x512xf32, #tpu.memory_space<vmem>>, %arg9: memref<512x256xbf16, #tpu.memory_space<vmem>>, %arg10: memref<1x256xf32, #tpu.memory_space<vmem>>, %arg11: memref<8x256xf32, #tpu.memory_space<vmem>>, %arg12: memref<8x128xf32, #tpu.memory_space<vmem>>) attributes {dimension_semantics = [#tpu.dimension_semantics<parallel>], iteration_bounds = array<i64: 1>, scalar_prefetch = 0 : i64, scratch_operands = 0 : i64, tpu.core_type = #tpu.core_type<tc>, window_params = [{transform_indices = @transform_0, window_bounds = array<i64: 8, 256>}, {transform_indices = @transform_1, window_bounds = array<i64: 8, 32>}, {pipeline_mode = #tpu.pipeline_mode<synchronous>, transform_indices = @transform_2, window_bounds = array<i64: 256, 512>}, {pipeline_mode = #tpu.pipeline_mode<synchronous>, transform_indices = @transform_3, window_bounds = array<i64: 1, 512>}, {pipeline_mode = #tpu.pipeline_mode<synchronous>, transform_indices = @transform_4, window_bounds = array<i64: 512, 128>}, {pipeline_mode = #tpu.pipeline_mode<synchronous>, transform_indices = @transform_5, window_bounds = array<i64: 1, 128>}, {pipeline_mode = #tpu.pipeline_mode<synchronous>, transform_indices = @transform_6, window_bounds = array<i64: 32, 512>}, {pipeline_mode = #tpu.pipeline_mode<synchronous>, transform_indices = @transform_7, window_bounds = array<i64: 1, 512>}, {pipeline_mode = #tpu.pipeline_mode<synchronous>, transform_indices = @transform_8, window_bounds = array<i64: 512, 256>}, {pipeline_mode = #tpu.pipeline_mode<synchronous>, transform_indices = @transform_9, window_bounds = array<i64: 1, 256>}, {transform_indices = @transform_10, window_bounds = array<i64: 8, 256>}, {transform_indices = @transform_11, window_bounds = array<i64: 8, 128>}]} {
    %c0 = arith.constant 0 : index
    %c0_0 = arith.constant 0 : index
    %0 = vector.load %arg1[%c0, %c0_0] : memref<8x256xbf16, #tpu.memory_space<vmem>>, vector<8x256xbf16>
    %c0_1 = arith.constant 0 : index
    %c0_2 = arith.constant 0 : index
    %1 = vector.load %arg2[%c0_1, %c0_2] : memref<8x32xf32, #tpu.memory_space<vmem>>, vector<8x32xf32>
    %c0_3 = arith.constant 0 : index
    %c0_4 = arith.constant 0 : index
    %2 = vector.load %arg3[%c0_3, %c0_4] : memref<256x512xbf16, #tpu.memory_space<vmem>>, vector<256x512xbf16>
    %cst = arith.constant dense<0.000000e+00> : vector<8x512xf32>
    %3 = tpu.matmul %0, %2, %cst {dimension_numbers = #tpu.dot_dimension_numbers<[1], [0], [0], [1], [0, 0, 1, 1], [], []>} : vector<8x256xbf16>, vector<256x512xbf16>, vector<8x512xf32> -> vector<8x512xf32>
    %c0_5 = arith.constant 0 : index
    %c0_6 = arith.constant 0 : index
    %4 = vector.load %arg4[%c0_5, %c0_6] : memref<1x512xf32, #tpu.memory_space<vmem>>, vector<1x512xf32>
    %5 = vector.broadcast %4 : vector<1x512xf32> to vector<8x512xf32>
    %6 = arith.addf %3, %5 : vector<8x512xf32>
    %cst_7 = arith.constant 0.000000e+00 : f32
    %7 = vector.broadcast %cst_7 : f32 to vector<8x512xf32>
    %8 = arith.maximumf %6, %7 : vector<8x512xf32>
    %9 = arith.truncf %8 : vector<8x512xf32> to vector<8x512xbf16>
    %c0_8 = arith.constant 0 : index
    %c0_9 = arith.constant 0 : index
    %10 = vector.load %arg5[%c0_8, %c0_9] : memref<512x128xbf16, #tpu.memory_space<vmem>>, vector<512x128xbf16>
    %cst_10 = arith.constant dense<0.000000e+00> : vector<8x128xf32>
    %11 = tpu.matmul %9, %10, %cst_10 {dimension_numbers = #tpu.dot_dimension_numbers<[1], [0], [0], [1], [0, 0, 1, 1], [], []>} : vector<8x512xbf16>, vector<512x128xbf16>, vector<8x128xf32> -> vector<8x128xf32>
    %c0_11 = arith.constant 0 : index
    %c0_12 = arith.constant 0 : index
    %12 = vector.load %arg6[%c0_11, %c0_12] : memref<1x128xf32, #tpu.memory_space<vmem>>, vector<1x128xf32>
    %13 = vector.broadcast %12 : vector<1x128xf32> to vector<8x128xf32>
    %14 = arith.addf %11, %13 : vector<8x128xf32>
    %15 = vector.extract_strided_slice %14 {offsets = [0, 0], sizes = [8, 32], strides = [1, 1]} : vector<8x128xf32> to vector<8x32xf32>
    %16 = vector.extract_strided_slice %14 {offsets = [0, 32], sizes = [8, 32], strides = [1, 1]} : vector<8x128xf32> to vector<8x32xf32>
    %cst_13 = arith.constant 5.000000e-01 : f32
    %17 = vector.broadcast %cst_13 : f32 to vector<8x32xf32>
    %18 = arith.mulf %17, %16 : vector<8x32xf32>
    %19 = math.exp %18 : vector<8x32xf32>
    %20 = arith.mulf %1, %19 : vector<8x32xf32>
    %21 = arith.addf %15, %20 : vector<8x32xf32>
    %22 = arith.truncf %21 : vector<8x32xf32> to vector<8x32xbf16>
    %c0_14 = arith.constant 0 : index
    %c0_15 = arith.constant 0 : index
    %23 = vector.load %arg7[%c0_14, %c0_15] : memref<32x512xbf16, #tpu.memory_space<vmem>>, vector<32x512xbf16>
    %cst_16 = arith.constant dense<0.000000e+00> : vector<8x512xf32>
    %24 = tpu.matmul %22, %23, %cst_16 {dimension_numbers = #tpu.dot_dimension_numbers<[1], [0], [0], [1], [0, 0, 1, 1], [], []>} : vector<8x32xbf16>, vector<32x512xbf16>, vector<8x512xf32> -> vector<8x512xf32>
    %c0_17 = arith.constant 0 : index
    %c0_18 = arith.constant 0 : index
    %25 = vector.load %arg8[%c0_17, %c0_18] : memref<1x512xf32, #tpu.memory_space<vmem>>, vector<1x512xf32>
    %26 = vector.broadcast %25 : vector<1x512xf32> to vector<8x512xf32>
    %27 = arith.addf %24, %26 : vector<8x512xf32>
    %cst_19 = arith.constant 0.000000e+00 : f32
    %28 = vector.broadcast %cst_19 : f32 to vector<8x512xf32>
    %29 = arith.maximumf %27, %28 : vector<8x512xf32>
    %30 = arith.truncf %29 : vector<8x512xf32> to vector<8x512xbf16>
    %c0_20 = arith.constant 0 : index
    %c0_21 = arith.constant 0 : index
    %31 = vector.load %arg9[%c0_20, %c0_21] : memref<512x256xbf16, #tpu.memory_space<vmem>>, vector<512x256xbf16>
    %cst_22 = arith.constant dense<0.000000e+00> : vector<8x256xf32>
    %32 = tpu.matmul %30, %31, %cst_22 {dimension_numbers = #tpu.dot_dimension_numbers<[1], [0], [0], [1], [0, 0, 1, 1], [], []>} : vector<8x512xbf16>, vector<512x256xbf16>, vector<8x256xf32> -> vector<8x256xf32>
    %c0_23 = arith.constant 0 : index
    %c0_24 = arith.constant 0 : index
    %33 = vector.load %arg10[%c0_23, %c0_24] : memref<1x256xf32, #tpu.memory_space<vmem>>, vector<1x256xf32>
    %34 = vector.broadcast %33 : vector<1x256xf32> to vector<8x256xf32>
    %35 = arith.addf %32, %34 : vector<8x256xf32>
    %cst_25 = arith.constant 5.000000e-01 : f32
    %36 = vector.broadcast %cst_25 : f32 to vector<8x256xf32>
    %37 = arith.mulf %36, %35 : vector<8x256xf32>
    %38 = math.tanh %37 : vector<8x256xf32>
    %cst_26 = arith.constant 5.000000e-01 : f32
    %39 = vector.broadcast %cst_26 : f32 to vector<8x256xf32>
    %40 = arith.mulf %39, %38 : vector<8x256xf32>
    %cst_27 = arith.constant 5.000000e-01 : f32
    %41 = vector.broadcast %cst_27 : f32 to vector<8x256xf32>
    %42 = arith.addf %40, %41 : vector<8x256xf32>
    %c0_28 = arith.constant 0 : index
    %c0_29 = arith.constant 0 : index
    %43 = vector.load %arg11[%c0_28, %c0_29] : memref<8x256xf32, #tpu.memory_space<vmem>>, vector<8x256xf32>
    tpu.vector_store %arg11[%c0_28, %c0_29], %42 {strides = array<i32>} : memref<8x256xf32, #tpu.memory_space<vmem>>, vector<8x256xf32>,
    %c0_30 = arith.constant 0 : index
    %c0_31 = arith.constant 0 : index
    %44 = vector.load %arg12[%c0_30, %c0_31] : memref<8x128xf32, #tpu.memory_space<vmem>>, vector<8x128xf32>
    tpu.vector_store %arg12[%c0_30, %c0_31], %14 {strides = array<i32>} : memref<8x128xf32, #tpu.memory_space<vmem>>, vector<8x128xf32>,
    return
  }
  func.func @transform_0(%arg0: i32) -> (i32, i32) {
    %c0_i32 = arith.constant 0 : i32
    %c0_i32_0 = arith.constant 0 : i32
    return %arg0, %c0_i32 : i32, i32
  }
  func.func @transform_1(%arg0: i32) -> (i32, i32) {
    %c0_i32 = arith.constant 0 : i32
    %c0_i32_0 = arith.constant 0 : i32
    return %arg0, %c0_i32 : i32, i32
  }
  func.func @transform_2(%arg0: i32) -> (i32, i32) {
    %c0_i32 = arith.constant 0 : i32
    %c0_i32_0 = arith.constant 0 : i32
    %c0_i32_1 = arith.constant 0 : i32
    return %c0_i32, %c0_i32_0 : i32, i32
  }
  func.func @transform_3(%arg0: i32) -> (i32, i32) {
    %c0_i32 = arith.constant 0 : i32
    %c0_i32_0 = arith.constant 0 : i32
    %c0_i32_1 = arith.constant 0 : i32
    return %c0_i32, %c0_i32_0 : i32, i32
  }
  func.func @transform_4(%arg0: i32) -> (i32, i32) {
    %c0_i32 = arith.constant 0 : i32
    %c0_i32_0 = arith.constant 0 : i32
    %c0_i32_1 = arith.constant 0 : i32
    return %c0_i32, %c0_i32_0 : i32, i32
  }
  func.func @transform_5(%arg0: i32) -> (i32, i32) {
    %c0_i32 = arith.constant 0 : i32
    %c0_i32_0 = arith.constant 0 : i32
    %c0_i32_1 = arith.constant 0 : i32
    return %c0_i32, %c0_i32_0 : i32, i32
  }
  func.func @transform_6(%arg0: i32) -> (i32, i32) {
    %c0_i32 = arith.constant 0 : i32
    %c0_i32_0 = arith.constant 0 : i32
    %c0_i32_1 = arith.constant 0 : i32
    return %c0_i32, %c0_i32_0 : i32, i32
  }
  func.func @transform_7(%arg0: i32) -> (i32, i32) {
    %c0_i32 = arith.constant 0 : i32
    %c0_i32_0 = arith.constant 0 : i32
    %c0_i32_1 = arith.constant 0 : i32
    return %c0_i32, %c0_i32_0 : i32, i32
  }
  func.func @transform_8(%arg0: i32) -> (i32, i32) {
    %c0_i32 = arith.constant 0 : i32
    %c0_i32_0 = arith.constant 0 : i32
    %c0_i32_1 = arith.constant 0 : i32
    return %c0_i32, %c0_i32_0 : i32, i32
  }
  func.func @transform_9(%arg0: i32) -> (i32, i32) {
    %c0_i32 = arith.constant 0 : i32
    %c0_i32_0 = arith.constant 0 : i32
    %c0_i32_1 = arith.constant 0 : i32
    return %c0_i32, %c0_i32_0 : i32, i32
  }
  func.func @transform_10(%arg0: i32) -> (i32, i32) {
    %c0_i32 = arith.constant 0 : i32
    %c0_i32_0 = arith.constant 0 : i32
    return %arg0, %c0_i32 : i32, i32
  }
  func.func @transform_11(%arg0: i32) -> (i32, i32) {
    %c0_i32 = arith.constant 0 : i32
    %c0_i32_0 = arith.constant 0 : i32
    return %arg0, %c0_i32 : i32, i32
  }
}

</mosaic_0001>

<llo_original>
// kernel: vae_forward.1
$region0: #{vae_forward.1}
  #allocation0 [shape = 'u32[]', space=smem, size = 0x4, offset = 0x4, fixed_abs, tag = 'smem constant byte address 0x4 - core index']
  #allocation1 [shape = 'u32[144,128]{1,0:T(1,128)}', space=vmem, size = 0x12000, scoped, tag = 'internal scratch']
  %s0 = inlined_call_operand.vmem [shape: bf16[8,256], index: 0, kind: input, shape index: {}]
  %s1 = inlined_call_operand.vmem [shape: f32[8,32], index: 1, kind: input, shape index: {}]
  %s2 = inlined_call_operand.hbm [shape: bf16[256,512], index: 2, kind: input, shape index: {}]
  %s3 = inlined_call_operand.vmem [shape: f32[1,512], index: 3, kind: input, shape index: {}]
  %s4 = inlined_call_operand.hbm [shape: bf16[512,128], index: 4, kind: input, shape index: {}]
  %s5 = inlined_call_operand.vmem [shape: f32[1,128], index: 5, kind: input, shape index: {}]
  %s6 = inlined_call_operand.vmem [shape: bf16[32,512], index: 6, kind: input, shape index: {}]
  %s7 = inlined_call_operand.vmem [shape: f32[1,512], index: 7, kind: input, shape index: {}]
  %s8 = inlined_call_operand.hbm [shape: bf16[512,256], index: 8, kind: input, shape index: {}]
  %s9 = inlined_call_operand.vmem [shape: f32[1,256], index: 9, kind: input, shape index: {}]
  %s10 = inlined_call_operand.vmem [shape: f32[8,256], index: 10, kind: output, shape index: {0}]
  %s11 = inlined_call_operand.vmem [shape: f32[8,128], index: 11, kind: output, shape index: {1}]
  %12 = xla_tuple %s10, %s11
  %s13 = sld [smem:[#allocation0]]
  $region70: #{vae_forward.1} parent=0
    _
  %s15 = ssub.s32 1, %s13
  %s16 = scalar_select 0, %s15, %s13
  $region1: #{vae_forward.1} parent=0
    #allocation2 [shape = 'u8[262144]{0}', space=vmem, size = 0x40000, scoped, tag = 'input window, operand 2, single buffered']
    #allocation3 [shape = 's32[1]{0}', space=sflag, size = 0x4, scoped, tag = 'scoped memory for vae_forward.1']
    #allocation4 [shape = 'u8[131072]{0}', space=vmem, size = 0x20000, scoped, tag = 'input window, operand 4, single buffered']
    #allocation5 [shape = 's32[1]{0}', space=sflag, size = 0x4, scoped, tag = 'scoped memory for vae_forward.1']
    #allocation6 [shape = 'u8[262144]{0}', space=vmem, size = 0x40000, scoped, tag = 'input window, operand 8, single buffered']
    %17 = vsyncpa [#allocation3], 0
    %18 = vsyncpa [#allocation5], 0
    // Predicated region
    $region2: #{vae_forward.1} parent=1 // pred_check
      _
    $region3: #{vae_forward.1} parent=1 // pred_check_branch
      %20 = sbr.rel (0) target = $region5
    $region4: #{vae_forward.1} parent=1 // pred_region
      _
    $region5: #{vae_forward.1} parent=1 // pred_fallthru
      _
    // Predicated region
    $region6: #{vae_forward.1} parent=1 // pred_check
      _
    $region7: #{vae_forward.1} parent=1 // pred_check_branch
      %22 = sbr.rel (0) target = $region9
    $region8: #{vae_forward.1} parent=1 // pred_region
      _
    $region9: #{vae_forward.1} parent=1 // pred_fallthru
      _
    // Predicated region
    $region10: #{vae_forward.1} parent=1 // pred_check
      _
    $region11: #{vae_forward.1} parent=1 // pred_check_branch
      %24 = sbr.rel (0) target = $region13
    $region12: #{vae_forward.1} parent=1 // pred_region
      %s26 = ssub.s32 8192, 8192
      %27 = vsyncadd [#allocation3], %s26
      %s28 = sshll.u32 [#allocation2], 4
      %s29 = int_to_ptr.vmem [resolvable:$true] %s28
      %34 = dma.hbm_to_vmem [thread:$0]  %s2, 8192, %s29, [#allocation3], 256, 256, 16
    $region13: #{vae_forward.1} parent=1 // pred_fallthru
      _
    // Predicated region
    $region14: #{vae_forward.1} parent=1 // pred_check
      _
    $region15: #{vae_forward.1} parent=1 // pred_check_branch
      %36 = sbr.rel (0) target = $region17
    $region16: #{vae_forward.1} parent=1 // pred_region
      _
    $region17: #{vae_forward.1} parent=1 // pred_fallthru
      _
    // Predicated region
    $region18: #{vae_forward.1} parent=1 // pred_check
      _
    $region19: #{vae_forward.1} parent=1 // pred_check_branch
      %38 = sbr.rel (0) target = $region21
    $region20: #{vae_forward.1} parent=1 // pred_region
      %s40 = ssub.s32 4096, 4096
      %41 = vsyncadd [#allocation5], %s40
      %s42 = sshll.u32 [#allocation4], 4
      %s43 = int_to_ptr.vmem [resolvable:$true] %s42
      %48 = dma.hbm_to_vmem [thread:$0]  %s4, 4096, %s43, [#allocation5], 64, 64, 4
    $region21: #{vae_forward.1} parent=1 // pred_fallthru
      _
    // Predicated region
    $region22: #{vae_forward.1} parent=1 // pred_check
      _
    $region23: #{vae_forward.1} parent=1 // pred_check_branch
      %50 = sbr.rel (0) target = $region25
    $region24: #{vae_forward.1} parent=1 // pred_region
      _
    $region25: #{vae_forward.1} parent=1 // pred_fallthru
      _
    // Predicated region
    $region26: #{vae_forward.1} parent=1 // pred_check
      _
    $region27: #{vae_forward.1} parent=1 // pred_check_branch
      %52 = sbr.rel (0) target = $region29
    $region28: #{vae_forward.1} parent=1 // pred_region
      _
    $region29: #{vae_forward.1} parent=1 // pred_fallthru
      _
    // Predicated region
    $region30: #{vae_forward.1} parent=1 // pred_check
      _
    $region31: #{vae_forward.1} parent=1 // pred_check_branch
      %54 = sbr.rel (0) target = $region33
    $region32: #{vae_forward.1} parent=1 // pred_region
      _
    $region33: #{vae_forward.1} parent=1 // pred_fallthru
      _
    // Predicated region
    $region34: #{vae_forward.1} parent=1 // pred_check
      _
    $region35: #{vae_forward.1} parent=1 // pred_check_branch
      %56 = sbr.rel (0) target = $region37
    $region36: #{vae_forward.1} parent=1 // pred_region
      %s58 = ssub.s32 8192, 8192
      %59 = vsyncadd [#allocation5], %s58
      %s60 = sshll.u32 [#allocation6], 4
      %s61 = int_to_ptr.vmem [resolvable:$true] %s60
      %66 = dma.hbm_to_vmem [thread:$0]  %s8, 8192, %s61, [#allocation5], 128, 128, 8
    $region37: #{vae_forward.1} parent=1 // pred_fallthru
      _
    // Predicated region
    $region38: #{vae_forward.1} parent=1 // pred_check
      _
    $region39: #{vae_forward.1} parent=1 // pred_check_branch
      %68 = sbr.rel (0) target = $region41
    $region40: #{vae_forward.1} parent=1 // pred_region
      _
    $region41: #{vae_forward.1} parent=1 // pred_fallthru
      _
    // Predicated region
    $region42: #{vae_forward.1} parent=1 // pred_check
      _
    $region43: #{vae_forward.1} parent=1 // pred_check_branch
      %70 = sbr.rel (0) target = $region45
    $region44: #{vae_forward.1} parent=1 // pred_region
      %71 = dma.done [#allocation3], 8192
    $region45: #{vae_forward.1} parent=1 // pred_fallthru
      _
    // Predicated region
    $region46: #{vae_forward.1} parent=1 // pred_check
      _
    $region47: #{vae_forward.1} parent=1 // pred_check_branch
      %73 = sbr.rel (0) target = $region49
    $region48: #{vae_forward.1} parent=1 // pred_region
      %74 = dma.done [#allocation5], 4096
    $region49: #{vae_forward.1} parent=1 // pred_fallthru
      _
    // Predicated region
    $region50: #{vae_forward.1} parent=1 // pred_check
      _
    $region51: #{vae_forward.1} parent=1 // pred_check_branch
      %76 = sbr.rel (0) target = $region53
    $region52: #{vae_forward.1} parent=1 // pred_region
      %77 = dma.done [#allocation5], 8192
    $region53: #{vae_forward.1} parent=1 // pred_fallthru
      _
    %v79 = vld [vmem:[%s0] sm:$0xff]
    %v80 = vld [vmem:[%s1] sm:$0xff]
    %v81 = vld [vmem:[#allocation2] sm:$0xff]
    %v82 = vld [vmem:[#allocation2 + $0x8] sm:$0xff]
    %v83 = vld [vmem:[#allocation2 + $0x10] sm:$0xff]
    %v84 = vld [vmem:[#allocation2 + $0x18] sm:$0xff]
    %v85 = vld [vmem:[#allocation2 + $0x20] sm:$0xff]
    %v86 = vld [vmem:[#allocation2 + $0x28] sm:$0xff]
    %v87 = vld [vmem:[#allocation2 + $0x30] sm:$0xff]
    %v88 = vld [vmem:[#allocation2 + $0x38] sm:$0xff]
    %v89 = vld [vmem:[#allocation2 + $0x40] sm:$0xff]
    %v90 = vld [vmem:[#allocation2 + $0x48] sm:$0xff]
    %v91 = vld [vmem:[#allocation2 + $0x50] sm:$0xff]
    %v92 = vld [vmem:[#allocation2 + $0x58] sm:$0xff]
    %v93 = vld [vmem:[#allocation2 + $0x60] sm:$0xff]
    %v94 = vld [vmem:[#allocation2 + $0x68] sm:$0xff]
    %v95 = vld [vmem:[#allocation2 + $0x70] sm:$0xff]
    %v96 = vld [vmem:[#allocation2 + $0x78] sm:$0xff]
    %v97 = vld [vmem:[#allocation2 + $0x80] sm:$0xff]
    %v98 = vld [vmem:[#allocation2 + $0x88] sm:$0xff]
    %v99 = vld [vmem:[#allocation2 + $0x90] sm:$0xff]
    %v100 = vld [vmem:[#allocation2 + $0x98] sm:$0xff]
    %v101 = vld [vmem:[#allocation2 + $0xa0] sm:$0xff]
    %v102 = vld [vmem:[#allocation2 + $0xa8] sm:$0xff]
    %v103 = vld [vmem:[#allocation2 + $0xb0] sm:$0xff]
    %v104 = vld [vmem:[#allocation2 + $0xb8] sm:$0xff]
    %v105 = vld [vmem:[#allocation2 + $0xc0] sm:$0xff]
    %v106 = vld [vmem:[#allocation2 + $0xc8] sm:$0xff]
    %v107 = vld [vmem:[#allocation2 + $0xd0] sm:$0xff]
    %v108 = vld [vmem:[#allocation2 + $0xd8] sm:$0xff]
    %v109 = vld [vmem:[#allocation2 + $0xe0] sm:$0xff]
    %v110 = vld [vmem:[#allocation2 + $0xe8] sm:$0xff]
    %v111 = vld [vmem:[#allocation2 + $0xf0] sm:$0xff]
    %v112 = vld [vmem:[#allocation2 + $0xf8] sm:$0xff]
    %v113 = vld [vmem:[#allocation2 + $0x100] sm:$0xff]
    %v114 = vld [vmem:[#allocation2 + $0x108] sm:$0xff]
    %v115 = vld [vmem:[#allocation2 + $0x110] sm:$0xff]
    %v116 = vld [vmem:[#allocation2 + $0x118] sm:$0xff]
    %v117 = vld [vmem:[#allocation2 + $0x120] sm:$0xff]
    %v118 = vld [vmem:[#allocation2 + $0x128] sm:$0xff]
    %v119 = vld [vmem:[#allocation2 + $0x130] sm:$0xff]
    %v120 = vld [vmem:[#allocation2 + $0x138] sm:$0xff]
    %v121 = vld [vmem:[#allocation2 + $0x140] sm:$0xff]
    %v122 = vld [vmem:[#allocation2 + $0x148] sm:$0xff]
    %v123 = vld [vmem:[#allocation2 + $0x150] sm:$0xff]
    %v124 = vld [vmem:[#allocation2 + $0x158] sm:$0xff]
    %v125 = vld [vmem:[#allocation2 + $0x160] sm:$0xff]
    %v126 = vld [vmem:[#allocation2 + $0x168] sm:$0xff]
    %v127 = vld [vmem:[#allocation2 + $0x170] sm:$0xff]
    %v128 = vld [vmem:[#allocation2 + $0x178] sm:$0xff]
    %v129 = vld [vmem:[#allocation2 + $0x180] sm:$0xff]
    %v130 = vld [vmem:[#allocation2 + $0x188] sm:$0xff]
    %v131 = vld [vmem:[#allocation2 + $0x190] sm:$0xff]
    %v132 = vld [vmem:[#allocation2 + $0x198] sm:$0xff]
    %v133 = vld [vmem:[#allocation2 + $0x1a0] sm:$0xff]
    %v134 = vld [vmem:[#allocation2 + $0x1a8] sm:$0xff]
    %v135 = vld [vmem:[#allocation2 + $0x1b0] sm:$0xff]
    %v136 = vld [vmem:[#allocation2 + $0x1b8] sm:$0xff]
    %v137 = vld [vmem:[#allocation2 + $0x1c0] sm:$0xff]
    %v138 = vld [vmem:[#allocation2 + $0x1c8] sm:$0xff]
    %v139 = vld [vmem:[#allocation2 + $0x1d0] sm:$0xff]
    %v140 = vld [vmem:[#allocation2 + $0x1d8] sm:$0xff]
    %v141 = vld [vmem:[#allocation2 + $0x1e0] sm:$0xff]
    %v142 = vld [vmem:[#allocation2 + $0x1e8] sm:$0xff]
    %v143 = vld [vmem:[#allocation2 + $0x1f0] sm:$0xff]
    %v144 = vld [vmem:[#allocation2 + $0x1f8] sm:$0xff]
    %v145 = vld [vmem:[%s3] sm:$0xf]
    %v147 = vlaneseq
    %v148 = vshrl.u32 %v147, 7
    %v149 = vsub.s32 0, %v148
    %v150 = vrot.slane %v145, %v149
    %v151 = vlaneseq
    %v152 = vshrl.u32 %v151, 7
    %v153 = vsub.s32 1, %v152
    %v154 = vrot.slane %v145, %v153
    %v155 = vlaneseq
    %v156 = vshrl.u32 %v155, 7
    %v157 = vsub.s32 2, %v156
    %v158 = vrot.slane %v145, %v157
    %v159 = vlaneseq
    %v160 = vshrl.u32 %v159, 7
    %v161 = vsub.s32 3, %v160
    %v162 = vrot.slane %v145, %v161
    %v168 = vunpack.c.l.b16 %v79
    %v169 = vunpack.c.h.b16 %v79
    %v170 = vpack.c.b16 %v168, %v168
    %v171 = vpack.c.b16 %v169, %v169
    %v238 = vunpack.c.l.b16 %v81
    %v239 = vunpack.c.h.b16 %v81
    %v240 = vunpack.c.l.b16 %v82
    %v241 = vunpack.c.h.b16 %v82
    %v242 = vunpack.c.l.b16 %v83
    %v243 = vunpack.c.h.b16 %v83
    %v244 = vunpack.c.l.b16 %v84
    %v245 = vunpack.c.h.b16 %v84
    %v246 = vunpack.c.l.b16 %v85
    %v247 = vunpack.c.h.b16 %v85
    %v248 = vunpack.c.l.b16 %v86
    %v249 = vunpack.c.h.b16 %v86
    %v250 = vunpack.c.l.b16 %v87
    %v251 = vunpack.c.h.b16 %v87
    %v252 = vunpack.c.l.b16 %v88
    %v253 = vunpack.c.h.b16 %v88
    %v254 = vunpack.c.l.b16 %v89
    %v255 = vunpack.c.h.b16 %v89
    %v256 = vunpack.c.l.b16 %v90
    %v257 = vunpack.c.h.b16 %v90
    %v258 = vunpack.c.l.b16 %v91
    %v259 = vunpack.c.h.b16 %v91
    %v260 = vunpack.c.l.b16 %v92
    %v261 = vunpack.c.h.b16 %v92
    %v262 = vunpack.c.l.b16 %v93
    %v263 = vunpack.c.h.b16 %v93
    %v264 = vunpack.c.l.b16 %v94
    %v265 = vunpack.c.h.b16 %v94
    %v266 = vunpack.c.l.b16 %v95
    %v267 = vunpack.c.h.b16 %v95
    %v268 = vunpack.c.l.b16 %v96
    %v269 = vunpack.c.h.b16 %v96
    %v270 = vunpack.c.l.b16 %v97
    %v271 = vunpack.c.h.b16 %v97
    %v272 = vunpack.c.l.b16 %v98
    %v273 = vunpack.c.h.b16 %v98
    %v274 = vunpack.c.l.b16 %v99
    %v275 = vunpack.c.h.b16 %v99
    %v276 = vunpack.c.l.b16 %v100
    %v277 = vunpack.c.h.b16 %v100
    %v278 = vunpack.c.l.b16 %v101
    %v279 = vunpack.c.h.b16 %v101
    %v280 = vunpack.c.l.b16 %v102
    %v281 = vunpack.c.h.b16 %v102
    %v282 = vunpack.c.l.b16 %v103
    %v283 = vunpack.c.h.b16 %v103
    %v284 = vunpack.c.l.b16 %v104
    %v285 = vunpack.c.h.b16 %v104
    %v286 = vunpack.c.l.b16 %v105
    %v287 = vunpack.c.h.b16 %v105
    %v288 = vunpack.c.l.b16 %v106
    %v289 = vunpack.c.h.b16 %v106
    %v290 = vunpack.c.l.b16 %v107
    %v291 = vunpack.c.h.b16 %v107
    %v292 = vunpack.c.l.b16 %v108
    %v293 = vunpack.c.h.b16 %v108
    %v294 = vunpack.c.l.b16 %v109
    %v295 = vunpack.c.h.b16 %v109
    %v296 = vunpack.c.l.b16 %v110
    %v297 = vunpack.c.h.b16 %v110
    %v298 = vunpack.c.l.b16 %v111
    %v299 = vunpack.c.h.b16 %v111
    %v300 = vunpack.c.l.b16 %v112
    %v301 = vunpack.c.h.b16 %v112
    %v302 = vunpack.c.l.b16 %v113
    %v303 = vunpack.c.h.b16 %v113
    %v304 = vunpack.c.l.b16 %v114
    %v305 = vunpack.c.h.b16 %v114
    %v306 = vunpack.c.l.b16 %v115
    %v307 = vunpack.c.h.b16 %v115
    %v308 = vunpack.c.l.b16 %v116
    %v309 = vunpack.c.h.b16 %v116
    %v310 = vunpack.c.l.b16 %v117
    %v311 = vunpack.c.h.b16 %v117
    %v312 = vunpack.c.l.b16 %v118
    %v313 = vunpack.c.h.b16 %v118
    %v314 = vunpack.c.l.b16 %v119
    %v315 = vunpack.c.h.b16 %v119
    %v316 = vunpack.c.l.b16 %v120
    %v317 = vunpack.c.h.b16 %v120
    %v318 = vunpack.c.l.b16 %v121
    %v319 = vunpack.c.h.b16 %v121
    %v320 = vunpack.c.l.b16 %v122
    %v321 = vunpack.c.h.b16 %v122
    %v322 = vunpack.c.l.b16 %v123
    %v323 = vunpack.c.h.b16 %v123
    %v324 = vunpack.c.l.b16 %v124
    %v325 = vunpack.c.h.b16 %v124
    %v326 = vunpack.c.l.b16 %v125
    %v327 = vunpack.c.h.b16 %v125
    %v328 = vunpack.c.l.b16 %v126
    %v329 = vunpack.c.h.b16 %v126
    %v330 = vunpack.c.l.b16 %v127
    %v331 = vunpack.c.h.b16 %v127
    %v332 = vunpack.c.l.b16 %v128
    %v333 = vunpack.c.h.b16 %v128
    %v334 = vunpack.c.l.b16 %v129
    %v335 = vunpack.c.h.b16 %v129
    %v336 = vunpack.c.l.b16 %v130
    %v337 = vunpack.c.h.b16 %v130
    %v338 = vunpack.c.l.b16 %v131
    %v339 = vunpack.c.h.b16 %v131
    %v340 = vunpack.c.l.b16 %v132
    %v341 = vunpack.c.h.b16 %v132
    %v342 = vunpack.c.l.b16 %v133
    %v343 = vunpack.c.h.b16 %v133
    %v344 = vunpack.c.l.b16 %v134
    %v345 = vunpack.c.h.b16 %v134
    %v346 = vunpack.c.l.b16 %v135
    %v347 = vunpack.c.h.b16 %v135
    %v348 = vunpack.c.l.b16 %v136
    %v349 = vunpack.c.h.b16 %v136
    %v350 = vunpack.c.l.b16 %v137
    %v351 = vunpack.c.h.b16 %v137
    %v352 = vunpack.c.l.b16 %v138
    %v353 = vunpack.c.h.b16 %v138
    %v354 = vunpack.c.l.b16 %v139
    %v355 = vunpack.c.h.b16 %v139
    %v356 = vunpack.c.l.b16 %v140
    %v357 = vunpack.c.h.b16 %v140
    %v358 = vunpack.c.l.b16 %v141
    %v359 = vunpack.c.h.b16 %v141
    %v360 = vunpack.c.l.b16 %v142
    %v361 = vunpack.c.h.b16 %v142
    %v362 = vunpack.c.l.b16 %v143
    %v363 = vunpack.c.h.b16 %v143
    %v364 = vunpack.c.l.b16 %v144
    %v365 = vunpack.c.h.b16 %v144
    %v366 = vpack.c.b16 %v242, %v238
    %v367 = vpack.c.b16 %v243, %v239
    %v368 = vpack.c.b16 %v244, %v240
    %v369 = vpack.c.b16 %v245, %v241
    %v370 = vpack.c.b16 %v250, %v246
    %v371 = vpack.c.b16 %v251, %v247
    %v372 = vpack.c.b16 %v252, %v248
    %v373 = vpack.c.b16 %v253, %v249
    %v374 = vpack.c.b16 %v258, %v254
    %v375 = vpack.c.b16 %v259, %v255
    %v376 = vpack.c.b16 %v260, %v256
    %v377 = vpack.c.b16 %v261, %v257
    %v378 = vpack.c.b16 %v266, %v262
    %v379 = vpack.c.b16 %v267, %v263
    %v380 = vpack.c.b16 %v268, %v264
    %v381 = vpack.c.b16 %v269, %v265
    %v382 = vpack.c.b16 %v274, %v270
    %v383 = vpack.c.b16 %v275, %v271
    %v384 = vpack.c.b16 %v276, %v272
    %v385 = vpack.c.b16 %v277, %v273
    %v386 = vpack.c.b16 %v282, %v278
    %v387 = vpack.c.b16 %v283, %v279
    %v388 = vpack.c.b16 %v284, %v280
    %v389 = vpack.c.b16 %v285, %v281
    %v390 = vpack.c.b16 %v290, %v286
    %v391 = vpack.c.b16 %v291, %v287
    %v392 = vpack.c.b16 %v292, %v288
    %v393 = vpack.c.b16 %v293, %v289
    %v394 = vpack.c.b16 %v298, %v294
    %v395 = vpack.c.b16 %v299, %v295
    %v396 = vpack.c.b16 %v300, %v296
    %v397 = vpack.c.b16 %v301, %v297
    %v398 = vpack.c.b16 %v306, %v302
    %v399 = vpack.c.b16 %v307, %v303
    %v400 = vpack.c.b16 %v308, %v304
    %v401 = vpack.c.b16 %v309, %v305
    %v402 = vpack.c.b16 %v314, %v310
    %v403 = vpack.c.b16 %v315, %v311
    %v404 = vpack.c.b16 %v316, %v312
    %v405 = vpack.c.b16 %v317, %v313
    %v406 = vpack.c.b16 %v322, %v318
    %v407 = vpack.c.b16 %v323, %v319
    %v408 = vpack.c.b16 %v324, %v320
    %v409 = vpack.c.b16 %v325, %v321
    %v410 = vpack.c.b16 %v330, %v326
    %v411 = vpack.c.b16 %v331, %v327
    %v412 = vpack.c.b16 %v332, %v328
    %v413 = vpack.c.b16 %v333, %v329
    %v414 = vpack.c.b16 %v338, %v334
    %v415 = vpack.c.b16 %v339, %v335
    %v416 = vpack.c.b16 %v340, %v336
    %v417 = vpack.c.b16 %v341, %v337
    %v418 = vpack.c.b16 %v346, %v342
    %v419 = vpack.c.b16 %v347, %v343
    %v420 = vpack.c.b16 %v348, %v344
    %v421 = vpack.c.b16 %v349, %v345
    %v422 = vpack.c.b16 %v354, %v350
    %v423 = vpack.c.b16 %v355, %v351
    %v424 = vpack.c.b16 %v356, %v352
    %v425 = vpack.c.b16 %v357, %v353
    %v426 = vpack.c.b16 %v362, %v358
    %v427 = vpack.c.b16 %v363, %v359
    %v428 = vpack.c.b16 %v364, %v360
    %v429 = vpack.c.b16 %v365, %v361
    %494 = vmatprep.subr.bf16.mxu0 %v367
    %495 = vmatpush1.bf16.msra.mxu0 %v366
    %496 = vmatprep.subr.bf16.mxu0 %v371
    %497 = vmatpush1.bf16.msra.mxu0 %v370
    %498 = vmatprep.subr.bf16.mxu0 %v375
    %499 = vmatpush1.bf16.msra.mxu0 %v374
    %500 = vmatprep.subr.bf16.mxu0 %v379
    %501 = vmatpush1.bf16.msra.mxu0 %v378
    %502 = vmatprep.subr.bf16.mxu0 %v383
    %503 = vmatpush1.bf16.msra.mxu0 %v382
    %504 = vmatprep.subr.bf16.mxu0 %v387
    %505 = vmatpush1.bf16.msra.mxu0 %v386
    %506 = vmatprep.subr.bf16.mxu0 %v391
    %507 = vmatpush1.bf16.msra.mxu0 %v390
    %508 = vmatprep.subr.bf16.mxu0 %v395
    %509 = vmatpush1.bf16.msra.mxu0 %v394
    %510 = vmatprep.subr.bf16.mxu0 %v399
    %511 = vmatpush1.bf16.msra.mxu0 %v398
    %512 = vmatprep.subr.bf16.mxu0 %v403
    %513 = vmatpush1.bf16.msra.mxu0 %v402
    %514 = vmatprep.subr.bf16.mxu0 %v407
    %515 = vmatpush1.bf16.msra.mxu0 %v406
    %516 = vmatprep.subr.bf16.mxu0 %v411
    %517 = vmatpush1.bf16.msra.mxu0 %v410
    %518 = vmatprep.subr.bf16.mxu0 %v415
    %519 = vmatpush1.bf16.msra.mxu0 %v414
    %520 = vmatprep.subr.bf16.mxu0 %v419
    %521 = vmatpush1.bf16.msra.mxu0 %v418
    %522 = vmatprep.subr.bf16.mxu0 %v423
    %523 = vmatpush1.bf16.msra.mxu0 %v422
    %524 = vmatprep.subr.bf16.mxu0 %v427
    %525 = vmatpush1.bf16.msra.mxu0 %v426
    %526 = vmatprep.mubr.bf16.mxu0 %v171
    %527 = vmatmul.mubr.bf16.gmra.mrb[0].mxu0 %v170
    %v528 = vpop.f32.mrb[0].mxu0
    %v529 = vadd.f32 %v150, %v528
    %v530 = vpop.f32.mrb[0].mxu0
    %v531 = vadd.f32 %v154, %v530
    %v532 = vpop.f32.mrb[0].mxu0
    %v533 = vpop.f32.mrb[0].mxu0
    %534 = vdwg.mxu0
    %535 = vmatprep.subr.bf16.mxu0 %v369
    %536 = vmatpush1.bf16.msra.mxu0 %v368
    %537 = vmatprep.subr.bf16.mxu0 %v373
    %538 = vmatpush1.bf16.msra.mxu0 %v372
    %539 = vmatprep.subr.bf16.mxu0 %v377
    %540 = vmatpush1.bf16.msra.mxu0 %v376
    %541 = vmatprep.subr.bf16.mxu0 %v381
    %542 = vmatpush1.bf16.msra.mxu0 %v380
    %543 = vmatprep.subr.bf16.mxu0 %v385
    %544 = vmatpush1.bf16.msra.mxu0 %v384
    %545 = vmatprep.subr.bf16.mxu0 %v389
    %546 = vmatpush1.bf16.msra.mxu0 %v388
    %547 = vmatprep.subr.bf16.mxu0 %v393
    %548 = vmatpush1.bf16.msra.mxu0 %v392
    %549 = vmatprep.subr.bf16.mxu0 %v397
    %550 = vmatpush1.bf16.msra.mxu0 %v396
    %551 = vmatprep.subr.bf16.mxu0 %v401
    %552 = vmatpush1.bf16.msra.mxu0 %v400
    %553 = vmatprep.subr.bf16.mxu0 %v405
    %554 = vmatpush1.bf16.msra.mxu0 %v404
    %555 = vmatprep.subr.bf16.mxu0 %v409
    %556 = vmatpush1.bf16.msra.mxu0 %v408
    %557 = vmatprep.subr.bf16.mxu0 %v413
    %558 = vmatpush1.bf16.msra.mxu0 %v412
    %559 = vmatprep.subr.bf16.mxu0 %v417
    %560 = vmatpush1.bf16.msra.mxu0 %v416
    %561 = vmatprep.subr.bf16.mxu0 %v421
    %562 = vmatpush1.bf16.msra.mxu0 %v420
    %563 = vmatprep.subr.bf16.mxu0 %v425
    %564 = vmatpush1.bf16.msra.mxu0 %v424
    %565 = vmatprep.subr.bf16.mxu0 %v429
    %566 = vmatpush1.bf16.msra.mxu0 %v428
    %567 = vmatprep.mubr.bf16.mxu0 %v171
    %568 = vmatmul.mubr.bf16.gmra.mrb[0].mxu0 %v170
    %v569 = vpop.f32.mrb[0].mxu0
    %v570 = vadd.f32 %v158, %v569
    %v571 = vpop.f32.mrb[0].mxu0
    %v572 = vadd.f32 %v162, %v571
    %v573 = vpop.f32.mrb[0].mxu0
    %v574 = vpop.f32.mrb[0].mxu0
    %575 = vdwg.mxu0
    %v576 = vmax.f32 %v529, 0.0
    %v577 = vmax.f32 %v531, 0.0
    %v578 = vmax.f32 %v570, 0.0
    %v579 = vmax.f32 %v572, 0.0
    %v580 = vpack.c.bf16 %v576, %v576
    %v581 = vpack.c.bf16 %v577, %v577
    %v582 = vpack.c.bf16 %v578, %v578
    %v583 = vpack.c.bf16 %v579, %v579
    %v584 = vld [vmem:[#allocation4] sm:$0xf]
    %v585 = vld [vmem:[#allocation4 + $0x4] sm:$0xf]
    %v586 = vld [vmem:[#allocation4 + $0x8] sm:$0xf]
    %v587 = vld [vmem:[#allocation4 + $0xc] sm:$0xf]
    %v588 = vld [vmem:[#allocation4 + $0x10] sm:$0xf]
    %v589 = vld [vmem:[#allocation4 + $0x14] sm:$0xf]
    %v590 = vld [vmem:[#allocation4 + $0x18] sm:$0xf]
    %v591 = vld [vmem:[#allocation4 + $0x1c] sm:$0xf]
    %v592 = vld [vmem:[#allocation4 + $0x20] sm:$0xf]
    %v593 = vld [vmem:[#allocation4 + $0x24] sm:$0xf]
    %v594 = vld [vmem:[#allocation4 + $0x28] sm:$0xf]
    %v595 = vld [vmem:[#allocation4 + $0x2c] sm:$0xf]
    %v596 = vld [vmem:[#allocation4 + $0x30] sm:$0xf]
    %v597 = vld [vmem:[#allocation4 + $0x34] sm:$0xf]
    %v598 = vld [vmem:[#allocation4 + $0x38] sm:$0xf]
    %v599 = vld [vmem:[#allocation4 + $0x3c] sm:$0xf]
    %v600 = vld [vmem:[#allocation4 + $0x40] sm:$0xf]
    %v601 = vld [vmem:[#allocation4 + $0x44] sm:$0xf]
    %v602 = vld [vmem:[#allocation4 + $0x48] sm:$0xf]
    %v603 = vld [vmem:[#allocation4 + $0x4c] sm:$0xf]
    %v604 = vld [vmem:[#allocation4 + $0x50] sm:$0xf]
    %v605 = vld [vmem:[#allocation4 + $0x54] sm:$0xf]
    %v606 = vld [vmem:[#allocation4 + $0x58] sm:$0xf]
    %v607 = vld [vmem:[#allocation4 + $0x5c] sm:$0xf]
    %v608 = vld [vmem:[#allocation4 + $0x60] sm:$0xf]
    %v609 = vld [vmem:[#allocation4 + $0x64] sm:$0xf]
    %v610 = vld [vmem:[#allocation4 + $0x68] sm:$0xf]
    %v611 = vld [vmem:[#allocation4 + $0x6c] sm:$0xf]
    %v612 = vld [vmem:[#allocation4 + $0x70] sm:$0xf]
    %v613 = vld [vmem:[#allocation4 + $0x74] sm:$0xf]
    %v614 = vld [vmem:[#allocation4 + $0x78] sm:$0xf]
    %v615 = vld [vmem:[#allocation4 + $0x7c] sm:$0xf]
    %v616 = vld [vmem:[#allocation4 + $0x80] sm:$0xf]
    %v617 = vld [vmem:[#allocation4 + $0x84] sm:$0xf]
    %v618 = vld [vmem:[#allocation4 + $0x88] sm:$0xf]
    %v619 = vld [vmem:[#allocation4 + $0x8c] sm:$0xf]
    %v620 = vld [vmem:[#allocation4 + $0x90] sm:$0xf]
    %v621 = vld [vmem:[#allocation4 + $0x94] sm:$0xf]
    %v622 = vld [vmem:[#allocation4 + $0x98] sm:$0xf]
    %v623 = vld [vmem:[#allocation4 + $0x9c] sm:$0xf]
    %v624 = vld [vmem:[#allocation4 + $0xa0] sm:$0xf]
    %v625 = vld [vmem:[#allocation4 + $0xa4] sm:$0xf]
    %v626 = vld [vmem:[#allocation4 + $0xa8] sm:$0xf]
    %v627 = vld [vmem:[#allocation4 + $0xac] sm:$0xf]
    %v628 = vld [vmem:[#allocation4 + $0xb0] sm:$0xf]
    %v629 = vld [vmem:[#allocation4 + $0xb4] sm:$0xf]
    %v630 = vld [vmem:[#allocation4 + $0xb8] sm:$0xf]
    %v631 = vld [vmem:[#allocation4 + $0xbc] sm:$0xf]
    %v632 = vld [vmem:[#allocation4 + $0xc0] sm:$0xf]
    %v633 = vld [vmem:[#allocation4 + $0xc4] sm:$0xf]
    %v634 = vld [vmem:[#allocation4 + $0xc8] sm:$0xf]
    %v635 = vld [vmem:[#allocation4 + $0xcc] sm:$0xf]
    %v636 = vld [vmem:[#allocation4 + $0xd0] sm:$0xf]
    %v637 = vld [vmem:[#allocation4 + $0xd4] sm:$0xf]
    %v638 = vld [vmem:[#allocation4 + $0xd8] sm:$0xf]
    %v639 = vld [vmem:[#allocation4 + $0xdc] sm:$0xf]
    %v640 = vld [vmem:[#allocation4 + $0xe0] sm:$0xf]
    %v641 = vld [vmem:[#allocation4 + $0xe4] sm:$0xf]
    %v642 = vld [vmem:[#allocation4 + $0xe8] sm:$0xf]
    %v643 = vld [vmem:[#allocation4 + $0xec] sm:$0xf]
    %v644 = vld [vmem:[#allocation4 + $0xf0] sm:$0xf]
    %v645 = vld [vmem:[#allocation4 + $0xf4] sm:$0xf]
    %v646 = vld [vmem:[#allocation4 + $0xf8] sm:$0xf]
    %v647 = vld [vmem:[#allocation4 + $0xfc] sm:$0xf]
    %v648 = vld [vmem:[%s5] sm:$0x1]
    %v650 = vlaneseq
    %v651 = vshrl.u32 %v650, 7
    %v652 = vsub.s32 0, %v651
    %v653 = vrot.slane %v648, %v652
    %v719 = vunpack.c.l.b16 %v584
    %v720 = vunpack.c.l.b16 %v585
    %v721 = vunpack.c.l.b16 %v586
    %v722 = vunpack.c.l.b16 %v587
    %v723 = vunpack.c.l.b16 %v588
    %v724 = vunpack.c.l.b16 %v589
    %v725 = vunpack.c.l.b16 %v590
    %v726 = vunpack.c.l.b16 %v591
    %v727 = vunpack.c.l.b16 %v592
    %v728 = vunpack.c.l.b16 %v593
    %v729 = vunpack.c.l.b16 %v594
    %v730 = vunpack.c.l.b16 %v595
    %v731 = vunpack.c.l.b16 %v596
    %v732 = vunpack.c.l.b16 %v597
    %v733 = vunpack.c.l.b16 %v598
    %v734 = vunpack.c.l.b16 %v599
    %v735 = vunpack.c.l.b16 %v600
    %v736 = vunpack.c.l.b16 %v601
    %v737 = vunpack.c.l.b16 %v602
    %v738 = vunpack.c.l.b16 %v603
    %v739 = vunpack.c.l.b16 %v604
    %v740 = vunpack.c.l.b16 %v605
    %v741 = vunpack.c.l.b16 %v606
    %v742 = vunpack.c.l.b16 %v607
    %v743 = vunpack.c.l.b16 %v608
    %v744 = vunpack.c.l.b16 %v609
    %v745 = vunpack.c.l.b16 %v610
    %v746 = vunpack.c.l.b16 %v611
    %v747 = vunpack.c.l.b16 %v612
    %v748 = vunpack.c.l.b16 %v613
    %v749 = vunpack.c.l.b16 %v614
    %v750 = vunpack.c.l.b16 %v615
    %v751 = vunpack.c.l.b16 %v616
    %v752 = vunpack.c.l.b16 %v617
    %v753 = vunpack.c.l.b16 %v618
    %v754 = vunpack.c.l.b16 %v619
    %v755 = vunpack.c.l.b16 %v620
    %v756 = vunpack.c.l.b16 %v621
    %v757 = vunpack.c.l.b16 %v622
    %v758 = vunpack.c.l.b16 %v623
    %v759 = vunpack.c.l.b16 %v624
    %v760 = vunpack.c.l.b16 %v625
    %v761 = vunpack.c.l.b16 %v626
    %v762 = vunpack.c.l.b16 %v627
    %v763 = vunpack.c.l.b16 %v628
    %v764 = vunpack.c.l.b16 %v629
    %v765 = vunpack.c.l.b16 %v630
    %v766 = vunpack.c.l.b16 %v631
    %v767 = vunpack.c.l.b16 %v632
    %v768 = vunpack.c.l.b16 %v633
    %v769 = vunpack.c.l.b16 %v634
    %v770 = vunpack.c.l.b16 %v635
    %v771 = vunpack.c.l.b16 %v636
    %v772 = vunpack.c.l.b16 %v637
    %v773 = vunpack.c.l.b16 %v638
    %v774 = vunpack.c.l.b16 %v639
    %v775 = vunpack.c.l.b16 %v640
    %v776 = vunpack.c.l.b16 %v641
    %v777 = vunpack.c.l.b16 %v642
    %v778 = vunpack.c.l.b16 %v643
    %v779 = vunpack.c.l.b16 %v644
    %v780 = vunpack.c.l.b16 %v645
    %v781 = vunpack.c.l.b16 %v646
    %v782 = vunpack.c.l.b16 %v647
    %v783 = vpack.c.b16 %v720, %v719
    %v784 = vpack.c.b16 %v722, %v721
    %v785 = vpack.c.b16 %v724, %v723
    %v786 = vpack.c.b16 %v726, %v725
    %v787 = vpack.c.b16 %v728, %v727
    %v788 = vpack.c.b16 %v730, %v729
    %v789 = vpack.c.b16 %v732, %v731
    %v790 = vpack.c.b16 %v734, %v733
    %v791 = vpack.c.b16 %v736, %v735
    %v792 = vpack.c.b16 %v738, %v737
    %v793 = vpack.c.b16 %v740, %v739
    %v794 = vpack.c.b16 %v742, %v741
    %v795 = vpack.c.b16 %v744, %v743
    %v796 = vpack.c.b16 %v746, %v745
    %v797 = vpack.c.b16 %v748, %v747
    %v798 = vpack.c.b16 %v750, %v749
    %v799 = vpack.c.b16 %v752, %v751
    %v800 = vpack.c.b16 %v754, %v753
    %v801 = vpack.c.b16 %v756, %v755
    %v802 = vpack.c.b16 %v758, %v757
    %v803 = vpack.c.b16 %v760, %v759
    %v804 = vpack.c.b16 %v762, %v761
    %v805 = vpack.c.b16 %v764, %v763
    %v806 = vpack.c.b16 %v766, %v765
    %v807 = vpack.c.b16 %v768, %v767
    %v808 = vpack.c.b16 %v770, %v769
    %v809 = vpack.c.b16 %v772, %v771
    %v810 = vpack.c.b16 %v774, %v773
    %v811 = vpack.c.b16 %v776, %v775
    %v812 = vpack.c.b16 %v778, %v777
    %v813 = vpack.c.b16 %v780, %v779
    %v814 = vpack.c.b16 %v782, %v781
    %847 = vmatprep.subr.bf16.mxu0 0
    %848 = vmatpush1.bf16.msra.mxu0 %v783
    %849 = vmatprep.subr.bf16.mxu0 0
    %850 = vmatpush1.bf16.msra.mxu0 %v784
    %851 = vmatprep.subr.bf16.mxu0 0
    %852 = vmatpush1.bf16.msra.mxu0 %v785
    %853 = vmatprep.subr.bf16.mxu0 0
    %854 = vmatpush1.bf16.msra.mxu0 %v786
    %855 = vmatprep.subr.bf16.mxu0 0
    %856 = vmatpush1.bf16.msra.mxu0 %v787
    %857 = vmatprep.subr.bf16.mxu0 0
    %858 = vmatpush1.bf16.msra.mxu0 %v788
    %859 = vmatprep.subr.bf16.mxu0 0
    %860 = vmatpush1.bf16.msra.mxu0 %v789
    %861 = vmatprep.subr.bf16.mxu0 0
    %862 = vmatpush1.bf16.msra.mxu0 %v790
    %863 = vmatprep.subr.bf16.mxu0 0
    %864 = vmatpush1.bf16.msra.mxu0 %v791
    %865 = vmatprep.subr.bf16.mxu0 0
    %866 = vmatpush1.bf16.msra.mxu0 %v792
    %867 = vmatprep.subr.bf16.mxu0 0
    %868 = vmatpush1.bf16.msra.mxu0 %v793
    %869 = vmatprep.subr.bf16.mxu0 0
    %870 = vmatpush1.bf16.msra.mxu0 %v794
    %871 = vmatprep.subr.bf16.mxu0 0
    %872 = vmatpush1.bf16.msra.mxu0 %v795
    %873 = vmatprep.subr.bf16.mxu0 0
    %874 = vmatpush1.bf16.msra.mxu0 %v796
    %875 = vmatprep.subr.bf16.mxu0 0
    %876 = vmatpush1.bf16.msra.mxu0 %v797
    %877 = vmatprep.subr.bf16.mxu0 0
    %878 = vmatpush1.bf16.msra.mxu0 %v798
    %879 = vmatprep.mubr.bf16.mxu0 %v581
    %880 = vmatmul.mubr.bf16.gmra.mrb[0].mxu0 %v580
    %v881 = vpop.f32.mrb[0].mxu0
    %v882 = vadd.f32 %v653, %v881
    %v883 = vpop.f32.mrb[0].mxu0
    %v884 = vpop.f32.mrb[0].mxu0
    %v885 = vpop.f32.mrb[0].mxu0
    %886 = vdwg.mxu0
    %887 = vmatprep.subr.bf16.mxu0 0
    %888 = vmatpush1.bf16.msra.mxu0 %v799
    %889 = vmatprep.subr.bf16.mxu0 0
    %890 = vmatpush1.bf16.msra.mxu0 %v800
    %891 = vmatprep.subr.bf16.mxu0 0
    %892 = vmatpush1.bf16.msra.mxu0 %v801
    %893 = vmatprep.subr.bf16.mxu0 0
    %894 = vmatpush1.bf16.msra.mxu0 %v802
    %895 = vmatprep.subr.bf16.mxu0 0
    %896 = vmatpush1.bf16.msra.mxu0 %v803
    %897 = vmatprep.subr.bf16.mxu0 0
    %898 = vmatpush1.bf16.msra.mxu0 %v804
    %899 = vmatprep.subr.bf16.mxu0 0
    %900 = vmatpush1.bf16.msra.mxu0 %v805
    %901 = vmatprep.subr.bf16.mxu0 0
    %902 = vmatpush1.bf16.msra.mxu0 %v806
    %903 = vmatprep.subr.bf16.mxu0 0
    %904 = vmatpush1.bf16.msra.mxu0 %v807
    %905 = vmatprep.subr.bf16.mxu0 0
    %906 = vmatpush1.bf16.msra.mxu0 %v808
    %907 = vmatprep.subr.bf16.mxu0 0
    %908 = vmatpush1.bf16.msra.mxu0 %v809
    %909 = vmatprep.subr.bf16.mxu0 0
    %910 = vmatpush1.bf16.msra.mxu0 %v810
    %911 = vmatprep.subr.bf16.mxu0 0
    %912 = vmatpush1.bf16.msra.mxu0 %v811
    %913 = vmatprep.subr.bf16.mxu0 0
    %914 = vmatpush1.bf16.msra.mxu0 %v812
    %915 = vmatprep.subr.bf16.mxu0 0
    %916 = vmatpush1.bf16.msra.mxu0 %v813
    %917 = vmatprep.subr.bf16.mxu0 0
    %918 = vmatpush1.bf16.msra.mxu0 %v814
    %919 = vmatprep.mubr.bf16.mxu0 %v583
    %920 = vmatmul.mubr.bf16.gmra.mrb[0].mxu0 %v582
    %v921 = vpop.f32.mrb[0].mxu0
    %v922 = vadd.f32 %v882, %v921
    %v923 = vpop.f32.mrb[0].mxu0
    %v924 = vpop.f32.mrb[0].mxu0
    %v925 = vpop.f32.mrb[0].mxu0
    %926 = vdwg.mxu0
    %v927 = vmul.f32 %v922, 0.5
    %v928 = vmul.f32 %v927, 1.442695
    %v929 = vpow.pop %v928
    %931 = vrot.lane.b32.xlu0 %v929, 96
    %v932 = vpop.permute.xlu0 %931
    %v934 = vmul.f32 %v80, %v932
    %v935 = vadd.f32 %v922, %v934
    %v936 = vpack.c.bf16 %v935, %v935
    %v937 = vld [vmem:[%s6] sm:$0xff]
    %v938 = vld [vmem:[%s6 + $0x8] sm:$0xff]
    %v939 = vld [vmem:[%s6 + $0x10] sm:$0xff]
    %v940 = vld [vmem:[%s6 + $0x18] sm:$0xff]
    %v941 = vld [vmem:[%s6 + $0x20] sm:$0xff]
    %v942 = vld [vmem:[%s6 + $0x28] sm:$0xff]
    %v943 = vld [vmem:[%s6 + $0x30] sm:$0xff]
    %v944 = vld [vmem:[%s6 + $0x38] sm:$0xff]
    %v945 = vld [vmem:[%s7] sm:$0xf]
    %v947 = vlaneseq
    %v948 = vshrl.u32 %v947, 7
    %v949 = vsub.s32 0, %v948
    %v950 = vrot.slane %v945, %v949
    %v951 = vlaneseq
    %v952 = vshrl.u32 %v951, 7
    %v953 = vsub.s32 1, %v952
    %v954 = vrot.slane %v945, %v953
    %v955 = vlaneseq
    %v956 = vshrl.u32 %v955, 7
    %v957 = vsub.s32 2, %v956
    %v958 = vrot.slane %v945, %v957
    %v959 = vlaneseq
    %v960 = vshrl.u32 %v959, 7
    %v961 = vsub.s32 3, %v960
    %v962 = vrot.slane %v945, %v961
    %v975 = vunpack.c.l.b16 %v937
    %v976 = vunpack.c.h.b16 %v937
    %v977 = vunpack.c.l.b16 %v938
    %v978 = vunpack.c.h.b16 %v938
    %v979 = vunpack.c.l.b16 %v939
    %v980 = vunpack.c.h.b16 %v939
    %v981 = vunpack.c.l.b16 %v940
    %v982 = vunpack.c.h.b16 %v940
    %v983 = vunpack.c.l.b16 %v941
    %v984 = vunpack.c.h.b16 %v941
    %v985 = vunpack.c.l.b16 %v942
    %v986 = vunpack.c.h.b16 %v942
    %v987 = vunpack.c.l.b16 %v943
    %v988 = vunpack.c.h.b16 %v943
    %v989 = vunpack.c.l.b16 %v944
    %v990 = vunpack.c.h.b16 %v944
    %v991 = vpack.c.b16 %v979, %v975
    %v992 = vpack.c.b16 %v980, %v976
    %v993 = vpack.c.b16 %v981, %v977
    %v994 = vpack.c.b16 %v982, %v978
    %v995 = vpack.c.b16 %v987, %v983
    %v996 = vpack.c.b16 %v988, %v984
    %v997 = vpack.c.b16 %v989, %v985
    %v998 = vpack.c.b16 %v990, %v986
    %vm1007 = vcmask 261120
    %v1009 = vsel %vm1007, %v936, 0
    %1011 = vmatprep.subr.bf16.mxu0 %v992
    %1012 = vmatpush1.bf16.msra.mxu0 %v991
    %1013 = vmatprep.subr.bf16.mxu0 %v996
    %1014 = vmatpush1.bf16.msra.mxu0 %v995
    %1015 = vmatprep.subr.bf16.mxu0 0
    %1016 = vmatpush1.bf16.msra.mxu0 0
    %1017 = vmatprep.subr.bf16.mxu0 0
    %1018 = vmatpush1.bf16.msra.mxu0 0
    %1019 = vmatprep.subr.bf16.mxu0 0
    %1020 = vmatpush1.bf16.msra.mxu0 0
    %1021 = vmatprep.subr.bf16.mxu0 0
    %1022 = vmatpush1.bf16.msra.mxu0 0
    %1023 = vmatprep.subr.bf16.mxu0 0
    %1024 = vmatpush1.bf16.msra.mxu0 0
    %1025 = vmatprep.subr.bf16.mxu0 0
    %1026 = vmatpush1.bf16.msra.mxu0 0
    %1027 = vmatprep.subr.bf16.mxu0 0
    %1028 = vmatpush1.bf16.msra.mxu0 0
    %1029 = vmatprep.subr.bf16.mxu0 0
    %1030 = vmatpush1.bf16.msra.mxu0 0
    %1031 = vmatprep.subr.bf16.mxu0 0
    %1032 = vmatpush1.bf16.msra.mxu0 0
    %1033 = vmatprep.subr.bf16.mxu0 0
    %1034 = vmatpush1.bf16.msra.mxu0 0
    %1035 = vmatprep.subr.bf16.mxu0 0
    %1036 = vmatpush1.bf16.msra.mxu0 0
    %1037 = vmatprep.subr.bf16.mxu0 0
    %1038 = vmatpush1.bf16.msra.mxu0 0
    %1039 = vmatprep.subr.bf16.mxu0 0
    %1040 = vmatpush1.bf16.msra.mxu0 0
    %1041 = vmatprep.subr.bf16.mxu0 0
    %1042 = vmatpush1.bf16.msra.mxu0 0
    %1043 = vmatprep.mubr.bf16.mxu0 0
    %1044 = vmatmul.mubr.bf16.gmra.mrb[0].mxu0 %v1009
    %v1045 = vpop.f32.mrb[0].mxu0
    %v1046 = vadd.f32 %v950, %v1045
    %v1047 = vpop.f32.mrb[0].mxu0
    %v1048 = vadd.f32 %v954, %v1047
    %v1049 = vpop.f32.mrb[0].mxu0
    %v1050 = vpop.f32.mrb[0].mxu0
    %1051 = vdwg.mxu0
    %1052 = vmatprep.subr.bf16.mxu0 %v994
    %1053 = vmatpush1.bf16.msra.mxu0 %v993
    %1054 = vmatprep.subr.bf16.mxu0 %v998
    %1055 = vmatpush1.bf16.msra.mxu0 %v997
    %1056 = vmatprep.subr.bf16.mxu0 0
    %1057 = vmatpush1.bf16.msra.mxu0 0
    %1058 = vmatprep.subr.bf16.mxu0 0
    %1059 = vmatpush1.bf16.msra.mxu0 0
    %1060 = vmatprep.subr.bf16.mxu0 0
    %1061 = vmatpush1.bf16.msra.mxu0 0
    %1062 = vmatprep.subr.bf16.mxu0 0
    %1063 = vmatpush1.bf16.msra.mxu0 0
    %1064 = vmatprep.subr.bf16.mxu0 0
    %1065 = vmatpush1.bf16.msra.mxu0 0
    %1066 = vmatprep.subr.bf16.mxu0 0
    %1067 = vmatpush1.bf16.msra.mxu0 0
    %1068 = vmatprep.subr.bf16.mxu0 0
    %1069 = vmatpush1.bf16.msra.mxu0 0
    %1070 = vmatprep.subr.bf16.mxu0 0
    %1071 = vmatpush1.bf16.msra.mxu0 0
    %1072 = vmatprep.subr.bf16.mxu0 0
    %1073 = vmatpush1.bf16.msra.mxu0 0
    %1074 = vmatprep.subr.bf16.mxu0 0
    %1075 = vmatpush1.bf16.msra.mxu0 0
    %1076 = vmatprep.subr.bf16.mxu0 0
    %1077 = vmatpush1.bf16.msra.mxu0 0
    %1078 = vmatprep.subr.bf16.mxu0 0
    %1079 = vmatpush1.bf16.msra.mxu0 0
    %1080 = vmatprep.subr.bf16.mxu0 0
    %1081 = vmatpush1.bf16.msra.mxu0 0
    %1082 = vmatprep.subr.bf16.mxu0 0
    %1083 = vmatpush1.bf16.msra.mxu0 0
    %1084 = vmatprep.mubr.bf16.mxu0 0
    %1085 = vmatmul.mubr.bf16.gmra.mrb[0].mxu0 %v1009
    %v1086 = vpop.f32.mrb[0].mxu0
    %v1087 = vadd.f32 %v958, %v1086
    %v1088 = vpop.f32.mrb[0].mxu0
    %v1089 = vadd.f32 %v962, %v1088
    %v1090 = vpop.f32.mrb[0].mxu0
    %v1091 = vpop.f32.mrb[0].mxu0
    %1092 = vdwg.mxu0
    %v1093 = vmax.f32 %v1046, 0.0
    %v1094 = vmax.f32 %v1048, 0.0
    %v1095 = vmax.f32 %v1087, 0.0
    %v1096 = vmax.f32 %v1089, 0.0
    %v1097 = vpack.c.bf16 %v1093, %v1093
    %v1098 = vpack.c.bf16 %v1094, %v1094
    %v1099 = vpack.c.bf16 %v1095, %v1095
    %v1100 = vpack.c.bf16 %v1096, %v1096
    %v1101 = vld [vmem:[#allocation6] sm:$0xff]
    %v1102 = vld [vmem:[#allocation6 + $0x8] sm:$0xff]
    %v1103 = vld [vmem:[#allocation6 + $0x10] sm:$0xff]
    %v1104 = vld [vmem:[#allocation6 + $0x18] sm:$0xff]
    %v1105 = vld [vmem:[#allocation6 + $0x20] sm:$0xff]
    %v1106 = vld [vmem:[#allocation6 + $0x28] sm:$0xff]
    %v1107 = vld [vmem:[#allocation6 + $0x30] sm:$0xff]
    %v1108 = vld [vmem:[#allocation6 + $0x38] sm:$0xff]
    %v1109 = vld [vmem:[#allocation6 + $0x40] sm:$0xff]
    %v1110 = vld [vmem:[#allocation6 + $0x48] sm:$0xff]
    %v1111 = vld [vmem:[#allocation6 + $0x50] sm:$0xff]
    %v1112 = vld [vmem:[#allocation6 + $0x58] sm:$0xff]
    %v1113 = vld [vmem:[#allocation6 + $0x60] sm:$0xff]
    %v1114 = vld [vmem:[#allocation6 + $0x68] sm:$0xff]
    %v1115 = vld [vmem:[#allocation6 + $0x70] sm:$0xff]
    %v1116 = vld [vmem:[#allocation6 + $0x78] sm:$0xff]
    %v1117 = vld [vmem:[#allocation6 + $0x80] sm:$0xff]
    %v1118 = vld [vmem:[#allocation6 + $0x88] sm:$0xff]
    %v1119 = vld [vmem:[#allocation6 + $0x90] sm:$0xff]
    %v1120 = vld [vmem:[#allocation6 + $0x98] sm:$0xff]
    %v1121 = vld [vmem:[#allocation6 + $0xa0] sm:$0xff]
    %v1122 = vld [vmem:[#allocation6 + $0xa8] sm:$0xff]
    %v1123 = vld [vmem:[#allocation6 + $0xb0] sm:$0xff]
    %v1124 = vld [vmem:[#allocation6 + $0xb8] sm:$0xff]
    %v1125 = vld [vmem:[#allocation6 + $0xc0] sm:$0xff]
    %v1126 = vld [vmem:[#allocation6 + $0xc8] sm:$0xff]
    %v1127 = vld [vmem:[#allocation6 + $0xd0] sm:$0xff]
    %v1128 = vld [vmem:[#allocation6 + $0xd8] sm:$0xff]
    %v1129 = vld [vmem:[#allocation6 + $0xe0] sm:$0xff]
    %v1130 = vld [vmem:[#allocation6 + $0xe8] sm:$0xff]
    %v1131 = vld [vmem:[#allocation6 + $0xf0] sm:$0xff]
    %v1132 = vld [vmem:[#allocation6 + $0xf8] sm:$0xff]
    %v1133 = vld [vmem:[#allocation6 + $0x100] sm:$0xff]
    %v1134 = vld [vmem:[#allocation6 + $0x108] sm:$0xff]
    %v1135 = vld [vmem:[#allocation6 + $0x110] sm:$0xff]
    %v1136 = vld [vmem:[#allocation6 + $0x118] sm:$0xff]
    %v1137 = vld [vmem:[#allocation6 + $0x120] sm:$0xff]
    %v1138 = vld [vmem:[#allocation6 + $0x128] sm:$0xff]
    %v1139 = vld [vmem:[#allocation6 + $0x130] sm:$0xff]
    %v1140 = vld [vmem:[#allocation6 + $0x138] sm:$0xff]
    %v1141 = vld [vmem:[#allocation6 + $0x140] sm:$0xff]
    %v1142 = vld [vmem:[#allocation6 + $0x148] sm:$0xff]
    %v1143 = vld [vmem:[#allocation6 + $0x150] sm:$0xff]
    %v1144 = vld [vmem:[#allocation6 + $0x158] sm:$0xff]
    %v1145 = vld [vmem:[#allocation6 + $0x160] sm:$0xff]
    %v1146 = vld [vmem:[#allocation6 + $0x168] sm:$0xff]
    %v1147 = vld [vmem:[#allocation6 + $0x170] sm:$0xff]
    %v1148 = vld [vmem:[#allocation6 + $0x178] sm:$0xff]
    %v1149 = vld [vmem:[#allocation6 + $0x180] sm:$0xff]
    %v1150 = vld [vmem:[#allocation6 + $0x188] sm:$0xff]
    %v1151 = vld [vmem:[#allocation6 + $0x190] sm:$0xff]
    %v1152 = vld [vmem:[#allocation6 + $0x198] sm:$0xff]
    %v1153 = vld [vmem:[#allocation6 + $0x1a0] sm:$0xff]
    %v1154 = vld [vmem:[#allocation6 + $0x1a8] sm:$0xff]
    %v1155 = vld [vmem:[#allocation6 + $0x1b0] sm:$0xff]
    %v1156 = vld [vmem:[#allocation6 + $0x1b8] sm:$0xff]
    %v1157 = vld [vmem:[#allocation6 + $0x1c0] sm:$0xff]
    %v1158 = vld [vmem:[#allocation6 + $0x1c8] sm:$0xff]
    %v1159 = vld [vmem:[#allocation6 + $0x1d0] sm:$0xff]
    %v1160 = vld [vmem:[#allocation6 + $0x1d8] sm:$0xff]
    %v1161 = vld [vmem:[#allocation6 + $0x1e0] sm:$0xff]
    %v1162 = vld [vmem:[#allocation6 + $0x1e8] sm:$0xff]
    %v1163 = vld [vmem:[#allocation6 + $0x1f0] sm:$0xff]
    %v1164 = vld [vmem:[#allocation6 + $0x1f8] sm:$0xff]
    %v1165 = vld [vmem:[%s9] sm:$0x3]
    %v1167 = vlaneseq
    %v1168 = vshrl.u32 %v1167, 7
    %v1169 = vsub.s32 0, %v1168
    %v1170 = vrot.slane %v1165, %v1169
    %v1171 = vlaneseq
    %v1172 = vshrl.u32 %v1171, 7
    %v1173 = vsub.s32 1, %v1172
    %v1174 = vrot.slane %v1165, %v1173
    %v1241 = vunpack.c.l.b16 %v1101
    %v1242 = vunpack.c.h.b16 %v1101
    %v1243 = vunpack.c.l.b16 %v1102
    %v1244 = vunpack.c.h.b16 %v1102
    %v1245 = vunpack.c.l.b16 %v1103
    %v1246 = vunpack.c.h.b16 %v1103
    %v1247 = vunpack.c.l.b16 %v1104
    %v1248 = vunpack.c.h.b16 %v1104
    %v1249 = vunpack.c.l.b16 %v1105
    %v1250 = vunpack.c.h.b16 %v1105
    %v1251 = vunpack.c.l.b16 %v1106
    %v1252 = vunpack.c.h.b16 %v1106
    %v1253 = vunpack.c.l.b16 %v1107
    %v1254 = vunpack.c.h.b16 %v1107
    %v1255 = vunpack.c.l.b16 %v1108
    %v1256 = vunpack.c.h.b16 %v1108
    %v1257 = vunpack.c.l.b16 %v1109
    %v1258 = vunpack.c.h.b16 %v1109
    %v1259 = vunpack.c.l.b16 %v1110
    %v1260 = vunpack.c.h.b16 %v1110
    %v1261 = vunpack.c.l.b16 %v1111
    %v1262 = vunpack.c.h.b16 %v1111
    %v1263 = vunpack.c.l.b16 %v1112
    %v1264 = vunpack.c.h.b16 %v1112
    %v1265 = vunpack.c.l.b16 %v1113
    %v1266 = vunpack.c.h.b16 %v1113
    %v1267 = vunpack.c.l.b16 %v1114
    %v1268 = vunpack.c.h.b16 %v1114
    %v1269 = vunpack.c.l.b16 %v1115
    %v1270 = vunpack.c.h.b16 %v1115
    %v1271 = vunpack.c.l.b16 %v1116
    %v1272 = vunpack.c.h.b16 %v1116
    %v1273 = vunpack.c.l.b16 %v1117
    %v1274 = vunpack.c.h.b16 %v1117
    %v1275 = vunpack.c.l.b16 %v1118
    %v1276 = vunpack.c.h.b16 %v1118
    %v1277 = vunpack.c.l.b16 %v1119
    %v1278 = vunpack.c.h.b16 %v1119
    %v1279 = vunpack.c.l.b16 %v1120
    %v1280 = vunpack.c.h.b16 %v1120
    %v1281 = vunpack.c.l.b16 %v1121
    %v1282 = vunpack.c.h.b16 %v1121
    %v1283 = vunpack.c.l.b16 %v1122
    %v1284 = vunpack.c.h.b16 %v1122
    %v1285 = vunpack.c.l.b16 %v1123
    %v1286 = vunpack.c.h.b16 %v1123
    %v1287 = vunpack.c.l.b16 %v1124
    %v1288 = vunpack.c.h.b16 %v1124
    %v1289 = vunpack.c.l.b16 %v1125
    %v1290 = vunpack.c.h.b16 %v1125
    %v1291 = vunpack.c.l.b16 %v1126
    %v1292 = vunpack.c.h.b16 %v1126
    %v1293 = vunpack.c.l.b16 %v1127
    %v1294 = vunpack.c.h.b16 %v1127
    %v1295 = vunpack.c.l.b16 %v1128
    %v1296 = vunpack.c.h.b16 %v1128
    %v1297 = vunpack.c.l.b16 %v1129
    %v1298 = vunpack.c.h.b16 %v1129
    %v1299 = vunpack.c.l.b16 %v1130
    %v1300 = vunpack.c.h.b16 %v1130
    %v1301 = vunpack.c.l.b16 %v1131
    %v1302 = vunpack.c.h.b16 %v1131
    %v1303 = vunpack.c.l.b16 %v1132
    %v1304 = vunpack.c.h.b16 %v1132
    %v1305 = vunpack.c.l.b16 %v1133
    %v1306 = vunpack.c.h.b16 %v1133
    %v1307 = vunpack.c.l.b16 %v1134
    %v1308 = vunpack.c.h.b16 %v1134
    %v1309 = vunpack.c.l.b16 %v1135
    %v1310 = vunpack.c.h.b16 %v1135
    %v1311 = vunpack.c.l.b16 %v1136
    %v1312 = vunpack.c.h.b16 %v1136
    %v1313 = vunpack.c.l.b16 %v1137
    %v1314 = vunpack.c.h.b16 %v1137
    %v1315 = vunpack.c.l.b16 %v1138
    %v1316 = vunpack.c.h.b16 %v1138
    %v1317 = vunpack.c.l.b16 %v1139
    %v1318 = vunpack.c.h.b16 %v1139
    %v1319 = vunpack.c.l.b16 %v1140
    %v1320 = vunpack.c.h.b16 %v1140
    %v1321 = vunpack.c.l.b16 %v1141
    %v1322 = vunpack.c.h.b16 %v1141
    %v1323 = vunpack.c.l.b16 %v1142
    %v1324 = vunpack.c.h.b16 %v1142
    %v1325 = vunpack.c.l.b16 %v1143
    %v1326 = vunpack.c.h.b16 %v1143
    %v1327 = vunpack.c.l.b16 %v1144
    %v1328 = vunpack.c.h.b16 %v1144
    %v1329 = vunpack.c.l.b16 %v1145
    %v1330 = vunpack.c.h.b16 %v1145
    %v1331 = vunpack.c.l.b16 %v1146
    %v1332 = vunpack.c.h.b16 %v1146
    %v1333 = vunpack.c.l.b16 %v1147
    %v1334 = vunpack.c.h.b16 %v1147
    %v1335 = vunpack.c.l.b16 %v1148
    %v1336 = vunpack.c.h.b16 %v1148
    %v1337 = vunpack.c.l.b16 %v1149
    %v1338 = vunpack.c.h.b16 %v1149
    %v1339 = vunpack.c.l.b16 %v1150
    %v1340 = vunpack.c.h.b16 %v1150
    %v1341 = vunpack.c.l.b16 %v1151
    %v1342 = vunpack.c.h.b16 %v1151
    %v1343 = vunpack.c.l.b16 %v1152
    %v1344 = vunpack.c.h.b16 %v1152
    %v1345 = vunpack.c.l.b16 %v1153
    %v1346 = vunpack.c.h.b16 %v1153
    %v1347 = vunpack.c.l.b16 %v1154
    %v1348 = vunpack.c.h.b16 %v1154
    %v1349 = vunpack.c.l.b16 %v1155
    %v1350 = vunpack.c.h.b16 %v1155
    %v1351 = vunpack.c.l.b16 %v1156
    %v1352 = vunpack.c.h.b16 %v1156
    %v1353 = vunpack.c.l.b16 %v1157
    %v1354 = vunpack.c.h.b16 %v1157
    %v1355 = vunpack.c.l.b16 %v1158
    %v1356 = vunpack.c.h.b16 %v1158
    %v1357 = vunpack.c.l.b16 %v1159
    %v1358 = vunpack.c.h.b16 %v1159
    %v1359 = vunpack.c.l.b16 %v1160
    %v1360 = vunpack.c.h.b16 %v1160
    %v1361 = vunpack.c.l.b16 %v1161
    %v1362 = vunpack.c.h.b16 %v1161
    %v1363 = vunpack.c.l.b16 %v1162
    %v1364 = vunpack.c.h.b16 %v1162
    %v1365 = vunpack.c.l.b16 %v1163
    %v1366 = vunpack.c.h.b16 %v1163
    %v1367 = vunpack.c.l.b16 %v1164
    %v1368 = vunpack.c.h.b16 %v1164
    %v1369 = vpack.c.b16 %v1243, %v1241
    %v1370 = vpack.c.b16 %v1244, %v1242
    %v1371 = vpack.c.b16 %v1247, %v1245
    %v1372 = vpack.c.b16 %v1248, %v1246
    %v1373 = vpack.c.b16 %v1251, %v1249
    %v1374 = vpack.c.b16 %v1252, %v1250
    %v1375 = vpack.c.b16 %v1255, %v1253
    %v1376 = vpack.c.b16 %v1256, %v1254
    %v1377 = vpack.c.b16 %v1259, %v1257
    %v1378 = vpack.c.b16 %v1260, %v1258
    %v1379 = vpack.c.b16 %v1263, %v1261
    %v1380 = vpack.c.b16 %v1264, %v1262
    %v1381 = vpack.c.b16 %v1267, %v1265
    %v1382 = vpack.c.b16 %v1268, %v1266
    %v1383 = vpack.c.b16 %v1271, %v1269
    %v1384 = vpack.c.b16 %v1272, %v1270
    %v1385 = vpack.c.b16 %v1275, %v1273
    %v1386 = vpack.c.b16 %v1276, %v1274
    %v1387 = vpack.c.b16 %v1279, %v1277
    %v1388 = vpack.c.b16 %v1280, %v1278
    %v1389 = vpack.c.b16 %v1283, %v1281
    %v1390 = vpack.c.b16 %v1284, %v1282
    %v1391 = vpack.c.b16 %v1287, %v1285
    %v1392 = vpack.c.b16 %v1288, %v1286
    %v1393 = vpack.c.b16 %v1291, %v1289
    %v1394 = vpack.c.b16 %v1292, %v1290
    %v1395 = vpack.c.b16 %v1295, %v1293
    %v1396 = vpack.c.b16 %v1296, %v1294
    %v1397 = vpack.c.b16 %v1299, %v1297
    %v1398 = vpack.c.b16 %v1300, %v1298
    %v1399 = vpack.c.b16 %v1303, %v1301
    %v1400 = vpack.c.b16 %v1304, %v1302
    %v1401 = vpack.c.b16 %v1307, %v1305
    %v1402 = vpack.c.b16 %v1308, %v1306
    %v1403 = vpack.c.b16 %v1311, %v1309
    %v1404 = vpack.c.b16 %v1312, %v1310
    %v1405 = vpack.c.b16 %v1315, %v1313
    %v1406 = vpack.c.b16 %v1316, %v1314
    %v1407 = vpack.c.b16 %v1319, %v1317
    %v1408 = vpack.c.b16 %v1320, %v1318
    %v1409 = vpack.c.b16 %v1323, %v1321
    %v1410 = vpack.c.b16 %v1324, %v1322
    %v1411 = vpack.c.b16 %v1327, %v1325
    %v1412 = vpack.c.b16 %v1328, %v1326
    %v1413 = vpack.c.b16 %v1331, %v1329
    %v1414 = vpack.c.b16 %v1332, %v1330
    %v1415 = vpack.c.b16 %v1335, %v1333
    %v1416 = vpack.c.b16 %v1336, %v1334
    %v1417 = vpack.c.b16 %v1339, %v1337
    %v1418 = vpack.c.b16 %v1340, %v1338
    %v1419 = vpack.c.b16 %v1343, %v1341
    %v1420 = vpack.c.b16 %v1344, %v1342
    %v1421 = vpack.c.b16 %v1347, %v1345
    %v1422 = vpack.c.b16 %v1348, %v1346
    %v1423 = vpack.c.b16 %v1351, %v1349
    %v1424 = vpack.c.b16 %v1352, %v1350
    %v1425 = vpack.c.b16 %v1355, %v1353
    %v1426 = vpack.c.b16 %v1356, %v1354
    %v1427 = vpack.c.b16 %v1359, %v1357
    %v1428 = vpack.c.b16 %v1360, %v1358
    %v1429 = vpack.c.b16 %v1363, %v1361
    %v1430 = vpack.c.b16 %v1364, %v1362
    %v1431 = vpack.c.b16 %v1367, %v1365
    %v1432 = vpack.c.b16 %v1368, %v1366
    %1497 = vmatprep.subr.bf16.mxu0 %v1370
    %1498 = vmatpush1.bf16.msra.mxu0 %v1369
    %1499 = vmatprep.subr.bf16.mxu0 %v1372
    %1500 = vmatpush1.bf16.msra.mxu0 %v1371
    %1501 = vmatprep.subr.bf16.mxu0 %v1374
    %1502 = vmatpush1.bf16.msra.mxu0 %v1373
    %1503 = vmatprep.subr.bf16.mxu0 %v1376
    %1504 = vmatpush1.bf16.msra.mxu0 %v1375
    %1505 = vmatprep.subr.bf16.mxu0 %v1378
    %1506 = vmatpush1.bf16.msra.mxu0 %v1377
    %1507 = vmatprep.subr.bf16.mxu0 %v1380
    %1508 = vmatpush1.bf16.msra.mxu0 %v1379
    %1509 = vmatprep.subr.bf16.mxu0 %v1382
    %1510 = vmatpush1.bf16.msra.mxu0 %v1381
    %1511 = vmatprep.subr.bf16.mxu0 %v1384
    %1512 = vmatpush1.bf16.msra.mxu0 %v1383
    %1513 = vmatprep.subr.bf16.mxu0 %v1386
    %1514 = vmatpush1.bf16.msra.mxu0 %v1385
    %1515 = vmatprep.subr.bf16.mxu0 %v1388
    %1516 = vmatpush1.bf16.msra.mxu0 %v1387
    %1517 = vmatprep.subr.bf16.mxu0 %v1390
    %1518 = vmatpush1.bf16.msra.mxu0 %v1389
    %1519 = vmatprep.subr.bf16.mxu0 %v1392
    %1520 = vmatpush1.bf16.msra.mxu0 %v1391
    %1521 = vmatprep.subr.bf16.mxu0 %v1394
    %1522 = vmatpush1.bf16.msra.mxu0 %v1393
    %1523 = vmatprep.subr.bf16.mxu0 %v1396
    %1524 = vmatpush1.bf16.msra.mxu0 %v1395
    %1525 = vmatprep.subr.bf16.mxu0 %v1398
    %1526 = vmatpush1.bf16.msra.mxu0 %v1397
    %1527 = vmatprep.subr.bf16.mxu0 %v1400
    %1528 = vmatpush1.bf16.msra.mxu0 %v1399
    %1529 = vmatprep.mubr.bf16.mxu0 %v1098
    %1530 = vmatmul.mubr.bf16.gmra.mrb[0].mxu0 %v1097
    %v1531 = vpop.f32.mrb[0].mxu0
    %v1532 = vadd.f32 %v1170, %v1531
    %v1533 = vpop.f32.mrb[0].mxu0
    %v1534 = vadd.f32 %v1174, %v1533
    %v1535 = vpop.f32.mrb[0].mxu0
    %v1536 = vpop.f32.mrb[0].mxu0
    %1537 = vdwg.mxu0
    %1538 = vmatprep.subr.bf16.mxu0 %v1402
    %1539 = vmatpush1.bf16.msra.mxu0 %v1401
    %1540 = vmatprep.subr.bf16.mxu0 %v1404
    %1541 = vmatpush1.bf16.msra.mxu0 %v1403
    %1542 = vmatprep.subr.bf16.mxu0 %v1406
    %1543 = vmatpush1.bf16.msra.mxu0 %v1405
    %1544 = vmatprep.subr.bf16.mxu0 %v1408
    %1545 = vmatpush1.bf16.msra.mxu0 %v1407
    %1546 = vmatprep.subr.bf16.mxu0 %v1410
    %1547 = vmatpush1.bf16.msra.mxu0 %v1409
    %1548 = vmatprep.subr.bf16.mxu0 %v1412
    %1549 = vmatpush1.bf16.msra.mxu0 %v1411
    %1550 = vmatprep.subr.bf16.mxu0 %v1414
    %1551 = vmatpush1.bf16.msra.mxu0 %v1413
    %1552 = vmatprep.subr.bf16.mxu0 %v1416
    %1553 = vmatpush1.bf16.msra.mxu0 %v1415
    %1554 = vmatprep.subr.bf16.mxu0 %v1418
    %1555 = vmatpush1.bf16.msra.mxu0 %v1417
    %1556 = vmatprep.subr.bf16.mxu0 %v1420
    %1557 = vmatpush1.bf16.msra.mxu0 %v1419
    %1558 = vmatprep.subr.bf16.mxu0 %v1422
    %1559 = vmatpush1.bf16.msra.mxu0 %v1421
    %1560 = vmatprep.subr.bf16.mxu0 %v1424
    %1561 = vmatpush1.bf16.msra.mxu0 %v1423
    %1562 = vmatprep.subr.bf16.mxu0 %v1426
    %1563 = vmatpush1.bf16.msra.mxu0 %v1425
    %1564 = vmatprep.subr.bf16.mxu0 %v1428
    %1565 = vmatpush1.bf16.msra.mxu0 %v1427
    %1566 = vmatprep.subr.bf16.mxu0 %v1430
    %1567 = vmatpush1.bf16.msra.mxu0 %v1429
    %1568 = vmatprep.subr.bf16.mxu0 %v1432
    %1569 = vmatpush1.bf16.msra.mxu0 %v1431
    %1570 = vmatprep.mubr.bf16.mxu0 %v1100
    %1571 = vmatmul.mubr.bf16.gmra.mrb[0].mxu0 %v1099
    %v1572 = vpop.f32.mrb[0].mxu0
    %v1573 = vadd.f32 %v1532, %v1572
    %v1574 = vpop.f32.mrb[0].mxu0
    %v1575 = vadd.f32 %v1534, %v1574
    %v1576 = vpop.f32.mrb[0].mxu0
    %v1577 = vpop.f32.mrb[0].mxu0
    %1578 = vdwg.mxu0
    %v1579 = vmul.f32 %v1573, 0.5
    %v1580 = vmul.f32 %v1575, 0.5
    %v1581 = vtanh.pop %v1579
    %v1582 = vtanh.pop %v1580
    %v1583 = vmul.f32 %v1581, 0.5
    %v1584 = vmul.f32 %v1582, 0.5
    %v1585 = vadd.f32 %v1583, 0.5
    %v1586 = vadd.f32 %v1584, 0.5
    %1587 = vst [vmem:[%s10] sm:$0xff] %v1585
    %1588 = vst [vmem:[%s10 + $0x8] sm:$0xff] %v1586
    %1589 = vst [vmem:[%s11] sm:$0xff] %v922
    // Predicated region
    $region54: #{vae_forward.1} parent=1 // pred_check
      _
    $region55: #{vae_forward.1} parent=1 // pred_check_branch
      %1591 = sbr.rel (0) target = $region57
    $region56: #{vae_forward.1} parent=1 // pred_region
      _
    $region57: #{vae_forward.1} parent=1 // pred_fallthru
      _
    // Predicated region
    $region58: #{vae_forward.1} parent=1 // pred_check
      _
    $region59: #{vae_forward.1} parent=1 // pred_check_branch
      %1593 = sbr.rel (0) target = $region61
    $region60: #{vae_forward.1} parent=1 // pred_region
      _
    $region61: #{vae_forward.1} parent=1 // pred_fallthru
      _
    // Predicated region
    $region62: #{vae_forward.1} parent=1 // pred_check
      _
    $region63: #{vae_forward.1} parent=1 // pred_check_branch
      %1595 = sbr.rel (0) target = $region65
    $region64: #{vae_forward.1} parent=1 // pred_region
      _
    $region65: #{vae_forward.1} parent=1 // pred_fallthru
      _
    // Predicated region
    $region66: #{vae_forward.1} parent=1 // pred_check
      _
    $region67: #{vae_forward.1} parent=1 // pred_check_branch
      %1597 = sbr.rel (0) target = $region69
    $region68: #{vae_forward.1} parent=1 // pred_region
      _
    $region69: #{vae_forward.1} parent=1 // pred_fallthru
      _
    %1598 = vsyncpa [#allocation3], 1
    %1599 = vsyncpa [#allocation5], 1

</llo_original>
